<compile_context>
chip_gen: v7x
topology: tpu7x:2x2x1
jax: 0.10.0
libtpu: 0.0.40
codegen_flags: <defaults>
</compile_context>

<pallas_src>
import jax
import jax.numpy as jnp
from jax.experimental import pallas as pl
from jax.experimental.pallas import tpu as pltpu

CHAR_EMBED = 50
KERNEL_SIZE = 5
LANE = 128


def _round_up(x, m):
    return (x + m - 1) // m * m


def _model_embeddings_kernel(idw_ref, wcomb_ref, convb_ref, wpg_ref, bpg_ref,
                             out_ref):
    """Char-CNN word embedding for one tile of words.

    idw_ref:   (K, TN, T)        int32 windowed char ids (T = padded conv len, T%8==0)
    wcomb_ref: (K, V_pad, E_pad) char table folded into conv weight (matmul dtype)
    convb_ref: (1, E_pad)        conv bias (f32)
    wpg_ref:   (E_pad, 2*E_pad)  fused highway [proj | gate] weight (matmul dtype)
    bpg_ref:   (1, 2*E_pad)      fused highway [proj | gate] bias (f32)
    out_ref:   (TN, E_pad)       f32 output
    """
    kk, tn, t = idw_ref.shape
    v_pad = wcomb_ref.shape[1]
    e_pad = out_ref.shape[-1]
    mm_dtype = wcomb_ref.dtype
    rows = tn * t

    # Embedding gather + Conv1d(k=5) as K accumulated one-hot matmuls on the MXU:
    #   conv[n, t, :] = sum_k table[ids[n, t+k]] @ conv_w[k]   (+ bias)
    iota_v = jax.lax.broadcasted_iota(jnp.int32, (tn, t, v_pad), 2)
    conv = jnp.zeros((rows, e_pad), jnp.float32)
    for k in range(kk):  # K=5, static unroll
        onehot = (iota_v == idw_ref[k][:, :, None]).astype(mm_dtype)
        conv = conv + jnp.dot(onehot.reshape(rows, v_pad), wcomb_ref[k],
                              preferred_element_type=jnp.float32)
    conv = conv + convb_ref[...]

    # ReLU + max-over-time.  T % 8 == 0 so the reshape is sublane-aligned; the
    # duplicated (clamped) trailing windows do not change the max.
    x_conv = jnp.max(jax.nn.relu(conv).reshape(tn, t, e_pad), axis=1)

    # Highway network: proj & gate fused into one (E_pad, 2*E_pad) matmul.
    pg = jnp.dot(x_conv.astype(mm_dtype), wpg_ref[...],
                 preferred_element_type=jnp.float32) + bpg_ref[...]
    proj = jax.nn.relu(pg[:, :e_pad])
    gate = jax.nn.sigmoid(pg[:, e_pad:])
    out = gate * proj + (1.0 - gate) * x_conv

    # TODO(synk): Dropout(p=0.3) is stochastic; identity here (eval-mode semantics).
    out_ref[...] = out.astype(out_ref.dtype)


def _default_tiling():
    """Generation-aware (tile_n, vmem_limit_bytes)."""
    vmem_cap = None
    try:
        vmem_cap = getattr(pltpu.get_tpu_info(), "vmem_capacity_bytes", None)
    except Exception:
        vmem_cap = None
    if vmem_cap is None:
        vmem_cap = 64 * 1024 * 1024            # conservative (v7x-sized)
    if vmem_cap >= 96 * 1024 * 1024:           # v5e / v6e: 128 MiB physical VMEM
        return 1024, 64 * 1024 * 1024
    return 512, 40 * 1024 * 1024               # v7x: 64 MiB physical VMEM, 2 TCs


def model_embeddings_forward(input_tensor, params, *, tile_n=None,
                             mm_dtype=jnp.bfloat16):
    """input_tensor: int32 (sentence_length, batch_size, max_word_length)
       returns float32 (sentence_length, batch_size, embed_size)"""
    sent_len, batch, mwl = input_tensor.shape
    if mwl < KERNEL_SIZE:
        raise ValueError(f"max_word_length ({mwl}) must be >= {KERNEL_SIZE}")
    n_words = sent_len * batch

    table = params["char_embedding"].astype(jnp.float32)       # (V, 50)
    conv_w = params["conv_w"].astype(jnp.float32)               # (K, C, E)
    embed_size = conv_w.shape[-1]
    v = table.shape[0]
    v_pad = _round_up(v, LANE)
    e_pad = _round_up(embed_size, LANE)
    pe = e_pad - embed_size

    # --- Weight prep (tiny, once per call) -------------------------------------
    # Fold the char-embedding table into the conv weight: wcomb[k, v] = table[v] @ conv_w[k]
    wcomb = jnp.einsum("vc,kce->kve", table, conv_w)             # (K, V, E) f32
    wcomb = jnp.pad(wcomb, ((0, 0), (0, v_pad - v), (0, pe))).astype(mm_dtype)
    convb = jnp.pad(params["conv_b"].astype(jnp.float32), ((0, 0), (0, pe)))
    wp = jnp.pad(params["wp"], ((0, pe), (0, pe)))
    wg = jnp.pad(params["wg"], ((0, pe), (0, pe)))
    wpg = jnp.concatenate([wp, wg], axis=1).astype(mm_dtype)     # (E_pad, 2*E_pad)
    bp = jnp.pad(params["bp"], ((0, 0), (0, pe)))
    bg = jnp.pad(params["bg"], ((0, 0), (0, pe)))
    bpg = jnp.concatenate([bp, bg], axis=1).astype(jnp.float32)  # (1, 2*E_pad)

    # --- Id prep: static conv windows, time axis padded to a multiple of 8 -----
    l_out = mwl - KERNEL_SIZE + 1
    t_pad = _round_up(l_out, 8)
    # window start clamped to the last valid one -> trailing windows are exact
    # duplicates of window (l_out-1) and cannot change the max-over-time.
    pos = jnp.array([[min(tt, l_out - 1) + k for tt in range(t_pad)]
                     for k in range(KERNEL_SIZE)], dtype=jnp.int32)  # (K, T)
    ids = input_tensor.reshape(n_words, mwl).astype(jnp.int32)
    idw = jnp.take(ids, pos, axis=1)                 # (N, K, T)
    idw = jnp.transpose(idw, (1, 0, 2))              # (K, N, T)

    # --- Tile over the word dimension (parallel axis) --------------------------
    d_tile, vmem_limit = _default_tiling()
    if tile_n is None:
        tile_n = d_tile
    # keep the grid at >= 2 steps where possible (v7x has 2 TensorCores/chip)
    tile_n = min(tile_n, max(8, _round_up((n_words + 1) // 2, 8)))
    n_pad = _round_up(n_words, tile_n)
    idw = jnp.pad(idw, ((0, 0), (0, n_pad - n_words), (0, 0)))

    const = lambda shape: pl.BlockSpec(shape, lambda i: (0,) * len(shape))

    out = pl.pallas_call(
        _model_embeddings_kernel,
        out_shape=jax.ShapeDtypeStruct((n_pad, e_pad), jnp.float32),
        grid_spec=pltpu.PrefetchScalarGridSpec(
            num_scalar_prefetch=0,
            grid=(n_pad // tile_n,),
            in_specs=[
                pl.BlockSpec((KERNEL_SIZE, tile_n, t_pad),
                             lambda i: (0, i, 0)),               # windowed char ids
                const((KERNEL_SIZE, v_pad, e_pad)),              # folded conv weights
                const((1, e_pad)),                               # conv bias
                const((e_pad, 2 * e_pad)),                       # highway [proj|gate] W
                const((1, 2 * e_pad)),                           # highway [proj|gate] b
            ],
            out_specs=pl.BlockSpec((tile_n, e_pad), lambda i: (i, 0)),
        ),
        compiler_params=pltpu.CompilerParams(
            dimension_semantics=("parallel",),
            vmem_limit_bytes=vmem_limit),
    )(idw, wcomb, convb, wpg, bpg)

    # Drop word padding and lane padding (padded rows/cols are garbage/zero).
    # If the consumer is another matmul, prefer returning the padded (n_pad, e_pad)
    # slab and slicing downstream instead of materializing this copy.
    return out[:n_words, :embed_size].reshape(sent_len, batch, embed_size)


def _reference_forward(input_tensor, params):
    """Pure-JAX reference of the same forward pass (for correctness check)."""
    x_emb = jnp.take(params["char_embedding"], input_tensor, axis=0)
    S, B, L, C = x_emb.shape
    x = x_emb.reshape(S * B, L, C)
    E = params["conv_w"].shape[-1]
    L_out = L - KERNEL_SIZE + 1
    acc = jnp.zeros((S * B, L_out, E), jnp.float32)
    for k in range(KERNEL_SIZE):
        acc = acc + jnp.einsum("nlc,ce->nle", x[:, k:k + L_out, :],
                               params["conv_w"][k])
    acc = acc + params["conv_b"]
    x_conv = jnp.max(jax.nn.relu(acc), axis=1)
    proj = jax.nn.relu(x_conv @ params["wp"] + params["bp"])
    gate = jax.nn.sigmoid(x_conv @ params["wg"] + params["bg"])
    out = gate * proj + (1.0 - gate) * x_conv
    return out.reshape(S, B, E)


if __name__ == "__main__":
    key = jax.random.PRNGKey(0)
    sent_len, batch, mwl = 8, 2, 16
    embed_size = 32
    char_vocab_size = 30

    ks = jax.random.split(key, 8)
    char_embedding = 0.1 * jax.random.normal(
        ks[0], (char_vocab_size, CHAR_EMBED), jnp.float32)
    char_embedding = char_embedding.at[0].set(0.0)   # padding_idx=0 (as in nn.Embedding)

    params = {
        "char_embedding": char_embedding,
        # conv weight stored as (K, C_in, C_out) == PyTorch (C_out, C_in, K).transpose(2,1,0)
        "conv_w": 0.05 * jax.random.normal(
            ks[1], (KERNEL_SIZE, CHAR_EMBED, embed_size), jnp.float32),
        "conv_b": 0.01 * jax.random.normal(ks[2], (1, embed_size), jnp.float32),
        "wp": 0.1 * jax.random.normal(ks[3], (embed_size, embed_size), jnp.float32),
        "bp": 0.01 * jax.random.normal(ks[4], (1, embed_size), jnp.float32),
        "wg": 0.1 * jax.random.normal(ks[5], (embed_size, embed_size), jnp.float32),
        "bg": 0.01 * jax.random.normal(ks[6], (1, embed_size), jnp.float32),
    }

    input_tensor = jax.random.randint(
        ks[7], (sent_len, batch, mwl), 0, char_vocab_size, dtype=jnp.int32)

    ref = _reference_forward(input_tensor, params)

    # f32 matmul path (tight check).
    out = model_embeddings_forward(input_tensor, params, mm_dtype=jnp.float32)
    out = jax.block_until_ready(out)
    assert out.shape == (sent_len, batch, embed_size), out.shape
    assert jnp.allclose(out, ref, atol=1e-5, rtol=1e-5), float(
        jnp.max(jnp.abs(out - ref)))

    # Default bf16-MXU path (f32 accumulation & element-wise): loose check.
    out_bf16 = model_embeddings_forward(input_tensor, params)
    out_bf16 = jax.block_until_ready(out_bf16)
    assert out_bf16.shape == (sent_len, batch, embed_size), out_bf16.shape
    assert jnp.allclose(out_bf16, ref, atol=2e-2, rtol=2e-2), float(
        jnp.max(jnp.abs(out_bf16 - ref)))

    print("KERNEL_OK")
</pallas_src>

<mosaic_0001>
module attributes {stable_mosaic.version = 11 : i64} {
  func.func @_model_embeddings_kernel(%arg0: i32, %arg1: memref<5x8x16xi32, #tpu.memory_space<vmem>>, %arg2: memref<5x128x128xf32, #tpu.memory_space<vmem>>, %arg3: memref<1x128xf32, #tpu.memory_space<vmem>>, %arg4: memref<128x256xf32, #tpu.memory_space<vmem>>, %arg5: memref<1x256xf32, #tpu.memory_space<vmem>>, %arg6: memref<8x128xf32, #tpu.memory_space<vmem>>) attributes {dimension_semantics = [#tpu.dimension_semantics<parallel>], iteration_bounds = array<i64: 2>, scalar_prefetch = 0 : i64, scratch_operands = 0 : i64, tpu.core_type = #tpu.core_type<tc>, window_params = [{transform_indices = @transform_0, window_bounds = array<i64: 5, 8, 16>}, {pipeline_mode = #tpu.pipeline_mode<synchronous>, transform_indices = @transform_1, window_bounds = array<i64: 5, 128, 128>}, {pipeline_mode = #tpu.pipeline_mode<synchronous>, transform_indices = @transform_2, window_bounds = array<i64: 1, 128>}, {pipeline_mode = #tpu.pipeline_mode<synchronous>, transform_indices = @transform_3, window_bounds = array<i64: 128, 256>}, {pipeline_mode = #tpu.pipeline_mode<synchronous>, transform_indices = @transform_4, window_bounds = array<i64: 1, 256>}, {transform_indices = @transform_5, window_bounds = array<i64: 8, 128>}]} {
    %0 = tpu.iota {dimensions = array<i32: 2>} : vector<8x16x128xi32>
    %cst = arith.constant 0.000000e+00 : f32
    %1 = vector.broadcast %cst : f32 to vector<128x128xf32>
    %c0 = arith.constant 0 : index
    %c0_0 = arith.constant 0 : index
    %c0_1 = arith.constant 0 : index
    %2 = vector.load %arg1[%c0, %c0_0, %c0_1] : memref<5x8x16xi32, #tpu.memory_space<vmem>>, vector<1x8x16xi32>
    %3 = vector.shape_cast %2 : vector<1x8x16xi32> to vector<8x16xi32>
    %4 = vector.shape_cast %3 : vector<8x16xi32> to vector<8x16x1xi32>
    %5 = vector.broadcast %4 : vector<8x16x1xi32> to vector<8x16x128xi32>
    %6 = arith.cmpi eq, %0, %5 : vector<8x16x128xi32>
    %7 = arith.extui %6 : vector<8x16x128xi1> to vector<8x16x128xi32>
    %8 = arith.sitofp %7 : vector<8x16x128xi32> to vector<8x16x128xf32>
    %9 = vector.shape_cast %8 : vector<8x16x128xf32> to vector<128x128xf32>
    %c0_2 = arith.constant 0 : index
    %c0_3 = arith.constant 0 : index
    %c0_4 = arith.constant 0 : index
    %10 = vector.load %arg2[%c0_2, %c0_3, %c0_4] : memref<5x128x128xf32, #tpu.memory_space<vmem>>, vector<1x128x128xf32>
    %11 = vector.shape_cast %10 : vector<1x128x128xf32> to vector<128x128xf32>
    %cst_5 = arith.constant dense<0.000000e+00> : vector<128x128xf32>
    %12 = tpu.matmul %9, %11, %cst_5 {dimension_numbers = #tpu.dot_dimension_numbers<[1], [0], [0], [1], [0, 0, 1, 1], [], []>} : vector<128x128xf32>, vector<128x128xf32>, vector<128x128xf32> -> vector<128x128xf32>
    %13 = arith.addf %1, %12 : vector<128x128xf32>
    %c1 = arith.constant 1 : index
    %c0_6 = arith.constant 0 : index
    %c0_7 = arith.constant 0 : index
    %14 = vector.load %arg1[%c1, %c0_6, %c0_7] : memref<5x8x16xi32, #tpu.memory_space<vmem>>, vector<1x8x16xi32>
    %15 = vector.shape_cast %14 : vector<1x8x16xi32> to vector<8x16xi32>
    %16 = vector.shape_cast %15 : vector<8x16xi32> to vector<8x16x1xi32>
    %17 = vector.broadcast %16 : vector<8x16x1xi32> to vector<8x16x128xi32>
    %18 = arith.cmpi eq, %0, %17 : vector<8x16x128xi32>
    %19 = arith.extui %18 : vector<8x16x128xi1> to vector<8x16x128xi32>
    %20 = arith.sitofp %19 : vector<8x16x128xi32> to vector<8x16x128xf32>
    %21 = vector.shape_cast %20 : vector<8x16x128xf32> to vector<128x128xf32>
    %c1_8 = arith.constant 1 : index
    %c0_9 = arith.constant 0 : index
    %c0_10 = arith.constant 0 : index
    %22 = vector.load %arg2[%c1_8, %c0_9, %c0_10] : memref<5x128x128xf32, #tpu.memory_space<vmem>>, vector<1x128x128xf32>
    %23 = vector.shape_cast %22 : vector<1x128x128xf32> to vector<128x128xf32>
    %cst_11 = arith.constant dense<0.000000e+00> : vector<128x128xf32>
    %24 = tpu.matmul %21, %23, %cst_11 {dimension_numbers = #tpu.dot_dimension_numbers<[1], [0], [0], [1], [0, 0, 1, 1], [], []>} : vector<128x128xf32>, vector<128x128xf32>, vector<128x128xf32> -> vector<128x128xf32>
    %25 = arith.addf %13, %24 : vector<128x128xf32>
    %c2 = arith.constant 2 : index
    %c0_12 = arith.constant 0 : index
    %c0_13 = arith.constant 0 : index
    %26 = vector.load %arg1[%c2, %c0_12, %c0_13] : memref<5x8x16xi32, #tpu.memory_space<vmem>>, vector<1x8x16xi32>
    %27 = vector.shape_cast %26 : vector<1x8x16xi32> to vector<8x16xi32>
    %28 = vector.shape_cast %27 : vector<8x16xi32> to vector<8x16x1xi32>
    %29 = vector.broadcast %28 : vector<8x16x1xi32> to vector<8x16x128xi32>
    %30 = arith.cmpi eq, %0, %29 : vector<8x16x128xi32>
    %31 = arith.extui %30 : vector<8x16x128xi1> to vector<8x16x128xi32>
    %32 = arith.sitofp %31 : vector<8x16x128xi32> to vector<8x16x128xf32>
    %33 = vector.shape_cast %32 : vector<8x16x128xf32> to vector<128x128xf32>
    %c2_14 = arith.constant 2 : index
    %c0_15 = arith.constant 0 : index
    %c0_16 = arith.constant 0 : index
    %34 = vector.load %arg2[%c2_14, %c0_15, %c0_16] : memref<5x128x128xf32, #tpu.memory_space<vmem>>, vector<1x128x128xf32>
    %35 = vector.shape_cast %34 : vector<1x128x128xf32> to vector<128x128xf32>
    %cst_17 = arith.constant dense<0.000000e+00> : vector<128x128xf32>
    %36 = tpu.matmul %33, %35, %cst_17 {dimension_numbers = #tpu.dot_dimension_numbers<[1], [0], [0], [1], [0, 0, 1, 1], [], []>} : vector<128x128xf32>, vector<128x128xf32>, vector<128x128xf32> -> vector<128x128xf32>
    %37 = arith.addf %25, %36 : vector<128x128xf32>
    %c3 = arith.constant 3 : index
    %c0_18 = arith.constant 0 : index
    %c0_19 = arith.constant 0 : index
    %38 = vector.load %arg1[%c3, %c0_18, %c0_19] : memref<5x8x16xi32, #tpu.memory_space<vmem>>, vector<1x8x16xi32>
    %39 = vector.shape_cast %38 : vector<1x8x16xi32> to vector<8x16xi32>
    %40 = vector.shape_cast %39 : vector<8x16xi32> to vector<8x16x1xi32>
    %41 = vector.broadcast %40 : vector<8x16x1xi32> to vector<8x16x128xi32>
    %42 = arith.cmpi eq, %0, %41 : vector<8x16x128xi32>
    %43 = arith.extui %42 : vector<8x16x128xi1> to vector<8x16x128xi32>
    %44 = arith.sitofp %43 : vector<8x16x128xi32> to vector<8x16x128xf32>
    %45 = vector.shape_cast %44 : vector<8x16x128xf32> to vector<128x128xf32>
    %c3_20 = arith.constant 3 : index
    %c0_21 = arith.constant 0 : index
    %c0_22 = arith.constant 0 : index
    %46 = vector.load %arg2[%c3_20, %c0_21, %c0_22] : memref<5x128x128xf32, #tpu.memory_space<vmem>>, vector<1x128x128xf32>
    %47 = vector.shape_cast %46 : vector<1x128x128xf32> to vector<128x128xf32>
    %cst_23 = arith.constant dense<0.000000e+00> : vector<128x128xf32>
    %48 = tpu.matmul %45, %47, %cst_23 {dimension_numbers = #tpu.dot_dimension_numbers<[1], [0], [0], [1], [0, 0, 1, 1], [], []>} : vector<128x128xf32>, vector<128x128xf32>, vector<128x128xf32> -> vector<128x128xf32>
    %49 = arith.addf %37, %48 : vector<128x128xf32>
    %c4 = arith.constant 4 : index
    %c0_24 = arith.constant 0 : index
    %c0_25 = arith.constant 0 : index
    %50 = vector.load %arg1[%c4, %c0_24, %c0_25] : memref<5x8x16xi32, #tpu.memory_space<vmem>>, vector<1x8x16xi32>
    %51 = vector.shape_cast %50 : vector<1x8x16xi32> to vector<8x16xi32>
    %52 = vector.shape_cast %51 : vector<8x16xi32> to vector<8x16x1xi32>
    %53 = vector.broadcast %52 : vector<8x16x1xi32> to vector<8x16x128xi32>
    %54 = arith.cmpi eq, %0, %53 : vector<8x16x128xi32>
    %55 = arith.extui %54 : vector<8x16x128xi1> to vector<8x16x128xi32>
    %56 = arith.sitofp %55 : vector<8x16x128xi32> to vector<8x16x128xf32>
    %57 = vector.shape_cast %56 : vector<8x16x128xf32> to vector<128x128xf32>
    %c4_26 = arith.constant 4 : index
    %c0_27 = arith.constant 0 : index
    %c0_28 = arith.constant 0 : index
    %58 = vector.load %arg2[%c4_26, %c0_27, %c0_28] : memref<5x128x128xf32, #tpu.memory_space<vmem>>, vector<1x128x128xf32>
    %59 = vector.shape_cast %58 : vector<1x128x128xf32> to vector<128x128xf32>
    %cst_29 = arith.constant dense<0.000000e+00> : vector<128x128xf32>
    %60 = tpu.matmul %57, %59, %cst_29 {dimension_numbers = #tpu.dot_dimension_numbers<[1], [0], [0], [1], [0, 0, 1, 1], [], []>} : vector<128x128xf32>, vector<128x128xf32>, vector<128x128xf32> -> vector<128x128xf32>
    %61 = arith.addf %49, %60 : vector<128x128xf32>
    %c0_30 = arith.constant 0 : index
    %c0_31 = arith.constant 0 : index
    %62 = vector.load %arg3[%c0_30, %c0_31] : memref<1x128xf32, #tpu.memory_space<vmem>>, vector<1x128xf32>
    %63 = vector.broadcast %62 : vector<1x128xf32> to vector<128x128xf32>
    %64 = arith.addf %61, %63 : vector<128x128xf32>
    %cst_32 = arith.constant 0.000000e+00 : f32
    %65 = vector.broadcast %cst_32 : f32 to vector<128x128xf32>
    %66 = arith.maximumf %64, %65 : vector<128x128xf32>
    %67 = vector.shape_cast %66 : vector<128x128xf32> to vector<8x16x128xf32>
    %cst_33 = arith.constant dense<0xFF800000> : vector<8x128xf32>
    %68 = vector.multi_reduction <maximumf>, %67, %cst_33 [1] : vector<8x16x128xf32> to vector<8x128xf32>
    %c0_34 = arith.constant 0 : index
    %c0_35 = arith.constant 0 : index
    %69 = vector.load %arg4[%c0_34, %c0_35] : memref<128x256xf32, #tpu.memory_space<vmem>>, vector<128x256xf32>
    %cst_36 = arith.constant dense<0.000000e+00> : vector<8x256xf32>
    %70 = tpu.matmul %68, %69, %cst_36 {dimension_numbers = #tpu.dot_dimension_numbers<[1], [0], [0], [1], [0, 0, 1, 1], [], []>} : vector<8x128xf32>, vector<128x256xf32>, vector<8x256xf32> -> vector<8x256xf32>
    %c0_37 = arith.constant 0 : index
    %c0_38 = arith.constant 0 : index
    %71 = vector.load %arg5[%c0_37, %c0_38] : memref<1x256xf32, #tpu.memory_space<vmem>>, vector<1x256xf32>
    %72 = vector.broadcast %71 : vector<1x256xf32> to vector<8x256xf32>
    %73 = arith.addf %70, %72 : vector<8x256xf32>
    %74 = vector.extract_strided_slice %73 {offsets = [0, 0], sizes = [8, 128], strides = [1, 1]} : vector<8x256xf32> to vector<8x128xf32>
    %cst_39 = arith.constant 0.000000e+00 : f32
    %75 = vector.broadcast %cst_39 : f32 to vector<8x128xf32>
    %76 = arith.maximumf %74, %75 : vector<8x128xf32>
    %77 = vector.extract_strided_slice %73 {offsets = [0, 128], sizes = [8, 128], strides = [1, 1]} : vector<8x256xf32> to vector<8x128xf32>
    %78 = arith.negf %77 : vector<8x128xf32>
    %79 = math.exp %78 : vector<8x128xf32>
    %cst_40 = arith.constant 1.000000e+00 : f32
    %80 = vector.broadcast %cst_40 : f32 to vector<8x128xf32>
    %81 = arith.addf %80, %79 : vector<8x128xf32>
    %82 = arith.divf %80, %81 : vector<8x128xf32>
    %83 = arith.mulf %82, %76 : vector<8x128xf32>
    %cst_41 = arith.constant 1.000000e+00 : f32
    %84 = vector.broadcast %cst_41 : f32 to vector<8x128xf32>
    %85 = arith.subf %84, %82 : vector<8x128xf32>
    %86 = arith.mulf %85, %68 : vector<8x128xf32>
    %87 = arith.addf %83, %86 : vector<8x128xf32>
    %c0_42 = arith.constant 0 : index
    %c0_43 = arith.constant 0 : index
    %88 = vector.load %arg6[%c0_42, %c0_43] : memref<8x128xf32, #tpu.memory_space<vmem>>, vector<8x128xf32>
    tpu.vector_store %arg6[%c0_42, %c0_43], %87 {strides = array<i32>} : memref<8x128xf32, #tpu.memory_space<vmem>>, vector<8x128xf32>,
    return
  }
  func.func @transform_0(%arg0: i32) -> (i32, i32, i32) {
    %c0_i32 = arith.constant 0 : i32
    %c0_i32_0 = arith.constant 0 : i32
    %c0_i32_1 = arith.constant 0 : i32
    return %c0_i32, %arg0, %c0_i32_0 : i32, i32, i32
  }
  func.func @transform_1(%arg0: i32) -> (i32, i32, i32) {
    %c0_i32 = arith.constant 0 : i32
    %c0_i32_0 = arith.constant 0 : i32
    %c0_i32_1 = arith.constant 0 : i32
    %c0_i32_2 = arith.constant 0 : i32
    return %c0_i32, %c0_i32_0, %c0_i32_1 : i32, i32, i32
  }
  func.func @transform_2(%arg0: i32) -> (i32, i32) {
    %c0_i32 = arith.constant 0 : i32
    %c0_i32_0 = arith.constant 0 : i32
    %c0_i32_1 = arith.constant 0 : i32
    return %c0_i32, %c0_i32_0 : i32, i32
  }
  func.func @transform_3(%arg0: i32) -> (i32, i32) {
    %c0_i32 = arith.constant 0 : i32
    %c0_i32_0 = arith.constant 0 : i32
    %c0_i32_1 = arith.constant 0 : i32
    return %c0_i32, %c0_i32_0 : i32, i32
  }
  func.func @transform_4(%arg0: i32) -> (i32, i32) {
    %c0_i32 = arith.constant 0 : i32
    %c0_i32_0 = arith.constant 0 : i32
    %c0_i32_1 = arith.constant 0 : i32
    return %c0_i32, %c0_i32_0 : i32, i32
  }
  func.func @transform_5(%arg0: i32) -> (i32, i32) {
    %c0_i32 = arith.constant 0 : i32
    %c0_i32_0 = arith.constant 0 : i32
    return %arg0, %c0_i32 : i32, i32
  }
}

</mosaic_0001>

<llo_original>
// kernel: tpu_custom_call.1
$region0: #{tpu_custom_call.1}
  #allocation0 [shape = 'u32[]', space=smem, size = 0x4, offset = 0x4, fixed_abs, tag = 'smem constant byte address 0x4 - core index']
  #allocation1 [shape = 'u32[144,128]{1,0:T(1,128)}', space=vmem, size = 0x12000, scoped, tag = 'internal scratch']
  %s0 = inlined_call_operand.hbm [shape: s32[5,16,16], index: 0, kind: input, shape index: {}]
  %s1 = inlined_call_operand.hbm [shape: f32[5,128,128], index: 1, kind: input, shape index: {}]
  %s2 = inlined_call_operand.vmem [shape: f32[1,128], index: 2, kind: input, shape index: {}]
  %s3 = inlined_call_operand.hbm [shape: f32[128,256], index: 3, kind: input, shape index: {}]
  %s4 = inlined_call_operand.vmem [shape: f32[1,256], index: 4, kind: input, shape index: {}]
  %s5 = inlined_call_operand.hbm [shape: f32[16,128], index: 5, kind: output, shape index: {}]
  %s6 = sld [smem:[#allocation0]]
  $region65: #{tpu_custom_call.1} parent=0
    _
  %s8 = ssub.s32 1, %s6
  %s9 = scalar_select 0, %s8, %s6
  $region1: #{tpu_custom_call.1} parent=0
    #allocation2 [shape = 'u8[40960]{0}', space=vmem, size = 0xa000, scoped, tag = 'input window, operand 0']
    #allocation3 [shape = 's32[2]{0}', space=sflag, size = 0x8, scoped, tag = 'scoped memory for tpu_custom_call.1']
    #allocation4 [shape = 's32[2]{0}', space=sflag, size = 0x8, scoped, tag = 'scoped memory for tpu_custom_call.1']
    #allocation5 [shape = 'u8[327680]{0}', space=vmem, size = 0x50000, scoped, tag = 'input window, operand 1, single buffered']
    #allocation6 [shape = 's32[1]{0}', space=sflag, size = 0x4, scoped, tag = 'scoped memory for tpu_custom_call.1']
    #allocation7 [shape = 'u8[131072]{0}', space=vmem, size = 0x20000, scoped, tag = 'input window, operand 3, single buffered']
    #allocation8 [shape = 'u8[8192]{0}', space=vmem, size = 0x2000, scoped, tag = 'output window, operand 0']
    %10 = vsyncpa [#allocation3], 0
    %s11 = scalar_lea.sflag [#allocation3], 1
    %12 = vsyncpa %s11, 0
    %13 = vsyncpa [#allocation6], 0
    %14 = vsyncpa [#allocation4], 0
    %s15 = scalar_lea.sflag [#allocation4], 1
    %16 = vsyncpa %s15, 0
    loop: start=0, step=1, limit=4
    $region2: #{tpu_custom_call.1} parent=1 // loop_pre_header
      _
    $region3: #{tpu_custom_call.1} parent=1 // loop_header
      %s18 = sphi 0, %s22
      %p19 = scmp.ge.s32.totalorder %s18, 4
      %s28 = sphi 0, %s30
      %s31 = sphi 0, %s28
      %s32 = sphi 0, %s31
      %s48 = sphi 0, %s32
      %s52 = sphi 0, %s52
      %s54 = sphi 0, %s52
      %s55 = sphi 0, %s54
      %s69 = sphi 0, %s55
      %s73 = sphi 0, %s73
      %s75 = sphi 0, %s73
      %s76 = sphi 0, %s75
      %s90 = sphi 0, %s76
      %s94 = sphi 0, %s94
      %s96 = sphi 0, %s94
      %s97 = sphi 0, %s96
      %s111 = sphi 0, %s97
      %s115 = sphi 0, %s115
      %s117 = sphi 0, %s115
      %s118 = sphi 0, %s117
      %s132 = sphi 0, %s118
      %s138 = sphi 0, %s140
      %s141 = sphi 0, %s138
      %s142 = sphi 0, %s141
      %s158 = sphi 0, %s142
    $region4: #{tpu_custom_call.1} parent=1 // loop_header_branch
      %21 = sbr.rel (%p19) target = $region8
    $region5: #{tpu_custom_call.1} parent=1 // loop_body
      %s23 = ssub.s32 %s18, 1
      %s24 = ssub.s32 %s18, 2
      %s25 = sadd.s32 %s18, 1
      %s26 = ssub.s32 %s18, %s25
      %p27 = scmp.eq.s32.totalorder %s26, 0
      %s29 = sadd.s32 %s28, 1
      %s30 = scalar_select %p27, %s28, %s29
      %p33 = pneg %p27
      %p34 = scmp.eq.s32.totalorder %s18, 1
      %p35 = por %p33, %p34
      %p36 = scmp.ne.s32.totalorder %s28, %s31
      %p37 = scmp.eq.s32.totalorder %s18, 0
      %p38 = por %p36, %p37
      %p39 = scmp.ne.s32.totalorder %s28, %s31
      %p40 = scmp.eq.s32.totalorder %s23, 1
      %p41 = por %p39, %p40
      %p42 = scmp.ne.s32.totalorder %s31, %s32
      %p43 = scmp.eq.s32.totalorder %s23, 0
      %p44 = por %p42, %p43
      %p45 = scmp.ne.s32.totalorder %s31, %s32
      %p46 = scmp.eq.s32.totalorder %s24, 1
      %p47 = por %p45, %p46
      %p49 = scmp.ne.s32.totalorder %s32, %s48
      %p50 = scmp.eq.s32.totalorder %s24, 0
      %p51 = por %p49, %p50
      %s53 = sadd.s32 %s52, 1
      %p56 = scmp.eq.s32.totalorder %s18, 1
      %p57 = scmp.ne.s32.totalorder %s52, %s54
      %p58 = scmp.eq.s32.totalorder %s18, 0
      %p59 = por %p57, %p58
      %p60 = scmp.ne.s32.totalorder %s52, %s54
      %p61 = scmp.eq.s32.totalorder %s23, 1
      %p62 = por %p60, %p61
      %p63 = scmp.ne.s32.totalorder %s54, %s55
      %p64 = scmp.eq.s32.totalorder %s23, 0
      %p65 = por %p63, %p64
      %p66 = scmp.ne.s32.totalorder %s54, %s55
      %p67 = scmp.eq.s32.totalorder %s24, 1
      %p68 = por %p66, %p67
      %p70 = scmp.ne.s32.totalorder %s55, %s69
      %p71 = scmp.eq.s32.totalorder %s24, 0
      %p72 = por %p70, %p71
      %s74 = sadd.s32 %s73, 1
      %p77 = scmp.eq.s32.totalorder %s18, 1
      %p78 = scmp.ne.s32.totalorder %s73, %s75
      %p79 = scmp.eq.s32.totalorder %s18, 0
      %p80 = por %p78, %p79
      %p81 = scmp.ne.s32.totalorder %s73, %s75
      %p82 = scmp.eq.s32.totalorder %s23, 1
      %p83 = por %p81, %p82
      %p84 = scmp.ne.s32.totalorder %s75, %s76
      %p85 = scmp.eq.s32.totalorder %s23, 0
      %p86 = por %p84, %p85
      %p87 = scmp.ne.s32.totalorder %s75, %s76
      %p88 = scmp.eq.s32.totalorder %s24, 1
      %p89 = por %p87, %p88
      %p91 = scmp.ne.s32.totalorder %s76, %s90
      %p92 = scmp.eq.s32.totalorder %s24, 0
      %p93 = por %p91, %p92
      %s95 = sadd.s32 %s94, 1
      %p98 = scmp.eq.s32.totalorder %s18, 1
      %p99 = scmp.ne.s32.totalorder %s94, %s96
      %p100 = scmp.eq.s32.totalorder %s18, 0
      %p101 = por %p99, %p100
      %p102 = scmp.ne.s32.totalorder %s94, %s96
      %p103 = scmp.eq.s32.totalorder %s23, 1
      %p104 = por %p102, %p103
      %p105 = scmp.ne.s32.totalorder %s96, %s97
      %p106 = scmp.eq.s32.totalorder %s23, 0
      %p107 = por %p105, %p106
      %p108 = scmp.ne.s32.totalorder %s96, %s97
      %p109 = scmp.eq.s32.totalorder %s24, 1
      %p110 = por %p108, %p109
      %p112 = scmp.ne.s32.totalorder %s97, %s111
      %p113 = scmp.eq.s32.totalorder %s24, 0
      %p114 = por %p112, %p113
      %s116 = sadd.s32 %s115, 1
      %p119 = scmp.eq.s32.totalorder %s18, 1
      %p120 = scmp.ne.s32.totalorder %s115, %s117
      %p121 = scmp.eq.s32.totalorder %s18, 0
      %p122 = por %p120, %p121
      %p123 = scmp.ne.s32.totalorder %s115, %s117
      %p124 = scmp.eq.s32.totalorder %s23, 1
      %p125 = por %p123, %p124
      %p126 = scmp.ne.s32.totalorder %s117, %s118
      %p127 = scmp.eq.s32.totalorder %s23, 0
      %p128 = por %p126, %p127
      %p129 = scmp.ne.s32.totalorder %s117, %s118
      %p130 = scmp.eq.s32.totalorder %s24, 1
      %p131 = por %p129, %p130
      %p133 = scmp.ne.s32.totalorder %s118, %s132
      %p134 = scmp.eq.s32.totalorder %s24, 0
      %p135 = por %p133, %p134
      %s136 = ssub.s32 %s18, %s25
      %p137 = scmp.eq.s32.totalorder %s136, 0
      %s139 = sadd.s32 %s138, 1
      %s140 = scalar_select %p137, %s138, %s139
      %p143 = pneg %p137
      %p144 = scmp.eq.s32.totalorder %s18, 1
      %p145 = por %p143, %p144
      %p146 = scmp.ne.s32.totalorder %s138, %s141
      %p147 = scmp.eq.s32.totalorder %s18, 0
      %p148 = por %p146, %p147
      %p149 = scmp.ne.s32.totalorder %s138, %s141
      %p150 = scmp.eq.s32.totalorder %s23, 1
      %p151 = por %p149, %p150
      %p152 = scmp.ne.s32.totalorder %s141, %s142
      %p153 = scmp.eq.s32.totalorder %s23, 0
      %p154 = por %p152, %p153
      %p155 = scmp.ne.s32.totalorder %s141, %s142
      %p156 = scmp.eq.s32.totalorder %s24, 1
      %p157 = por %p155, %p156
      %p159 = scmp.ne.s32.totalorder %s142, %s158
      %p160 = scmp.eq.s32.totalorder %s24, 0
      %p161 = por %p159, %p160
      %p162 = scmp.le.s32.totalorder 1, %s18
      %p163 = scmp.lt.s32.totalorder %s18, 3
      %p164 = pnand %p162, %p163
      %p165 = pneg %p164
      // Predicated region
      $region9: #{tpu_custom_call.1} parent=5 // pred_check
        _
      $region10: #{tpu_custom_call.1} parent=5 // pred_check_branch
        %167 = sbr.rel (%p164) target = $region12
      $region11: #{tpu_custom_call.1} parent=5 // pred_region
        %s168 = ssub.s32 %s18, 1
        // Predicated region
        $region13: #{tpu_custom_call.1} parent=11 // pred_check
          %p169 = pneg %p65
        $region14: #{tpu_custom_call.1} parent=11 // pred_check_branch
          %171 = sbr.rel (%p169) target = $region16
        $region15: #{tpu_custom_call.1} parent=11 // pred_region
          %s173 = ssub.s32 10240, 10240
          %174 = vsyncadd [#allocation6], %s173
          %s175 = sshll.u32 [#allocation5], 4
          %s176 = int_to_ptr.vmem [resolvable:$true] %s175
          %181 = dma.hbm_to_vmem [thread:$0]  %s1, 10240, %s176, [#allocation6], 128, 128, 8
        $region16: #{tpu_custom_call.1} parent=11 // pred_fallthru
          _
        // Predicated region
        $region17: #{tpu_custom_call.1} parent=11 // pred_check
          %p182 = pneg %p86
        $region18: #{tpu_custom_call.1} parent=11 // pred_check_branch
          %184 = sbr.rel (%p182) target = $region20
        $region19: #{tpu_custom_call.1} parent=11 // pred_region
          _
        $region20: #{tpu_custom_call.1} parent=11 // pred_fallthru
          _
        // Predicated region
        $region21: #{tpu_custom_call.1} parent=11 // pred_check
          %p185 = pneg %p107
        $region22: #{tpu_custom_call.1} parent=11 // pred_check_branch
          %187 = sbr.rel (%p185) target = $region24
        $region23: #{tpu_custom_call.1} parent=11 // pred_region
          %s189 = ssub.s32 4096, 4096
          %190 = vsyncadd [#allocation6], %s189
          %s191 = sshll.u32 [#allocation7], 4
          %s192 = int_to_ptr.vmem [resolvable:$true] %s191
          %197 = dma.hbm_to_vmem [thread:$0]  %s3, 4096, %s192, [#allocation6], 256, 256, 16
        $region24: #{tpu_custom_call.1} parent=11 // pred_fallthru
          _
        // Predicated region
        $region25: #{tpu_custom_call.1} parent=11 // pred_check
          %p198 = pneg %p128
        $region26: #{tpu_custom_call.1} parent=11 // pred_check_branch
          %200 = sbr.rel (%p198) target = $region28
        $region27: #{tpu_custom_call.1} parent=11 // pred_region
          _
        $region28: #{tpu_custom_call.1} parent=11 // pred_fallthru
          _
      $region12: #{tpu_custom_call.1} parent=5 // pred_fallthru
        _
      %p201 = scmp.lt.s32.totalorder %s18, 2
      // Predicated region
      $region29: #{tpu_custom_call.1} parent=5 // pred_check
        %p202 = pneg %p201
      $region30: #{tpu_custom_call.1} parent=5 // pred_check_branch
        %204 = sbr.rel (%p202) target = $region32
      $region31: #{tpu_custom_call.1} parent=5 // pred_region
        // Predicated region
        $region33: #{tpu_custom_call.1} parent=31 // pred_check
          %p205 = pneg %p38
        $region34: #{tpu_custom_call.1} parent=31 // pred_check_branch
          %207 = sbr.rel (%p205) target = $region36
        $region35: #{tpu_custom_call.1} parent=31 // pred_region
          %s208 = sand.u32 %s28, 1
          %s209 = scalar_lea.sflag [#allocation3], %s208
          %s210 = sand.u32 %s28, 1
          %s211 = smul.addr %s210, 40
          %s212 = scalar_lea.vmem [#allocation2], %s211
          %s214 = ssub.s32 640, 640
          %215 = vsyncadd %s209, %s214
          %s216 = smul.addr %s18, 128
          %s217 = scalar_lea.hbm %s0, %s216
          %s218 = sshll.u32 %s212, 4
          %s219 = int_to_ptr.vmem [resolvable:$true] %s218
          %224 = dma.hbm_to_vmem [thread:$0]  %s217, 640, %s219, %s209, 256, 128, 8
        $region36: #{tpu_custom_call.1} parent=31 // pred_fallthru
          _
      $region32: #{tpu_custom_call.1} parent=5 // pred_fallthru
        _
      %p225 = scmp.le.s32.totalorder 1, %s18
      %p226 = scmp.lt.s32.totalorder %s18, 3
      %p227 = pnand %p225, %p226
      %p228 = pneg %p227
      // Predicated region
      $region37: #{tpu_custom_call.1} parent=5 // pred_check
        _
      $region38: #{tpu_custom_call.1} parent=5 // pred_check_branch
        %230 = sbr.rel (%p227) target = $region40
      $region39: #{tpu_custom_call.1} parent=5 // pred_region
        %s231 = ssub.s32 %s18, 1
        %s232 = sand.u32 %s31, 1
        %s233 = scalar_lea.sflag [#allocation3], %s232
        %s234 = sand.u32 %s31, 1
        %s235 = smul.addr %s234, 40
        %s236 = scalar_lea.vmem [#allocation2], %s235
        // Predicated region
        $region41: #{tpu_custom_call.1} parent=39 // pred_check
          %p237 = pneg %p44
        $region42: #{tpu_custom_call.1} parent=39 // pred_check_branch
          %239 = sbr.rel (%p237) target = $region44
        $region43: #{tpu_custom_call.1} parent=39 // pred_region
          %240 = dma.done %s233, 640
        $region44: #{tpu_custom_call.1} parent=39 // pred_fallthru
          _
        // Predicated region
        $region45: #{tpu_custom_call.1} parent=39 // pred_check
          %p241 = pneg %p65
        $region46: #{tpu_custom_call.1} parent=39 // pred_check_branch
          %243 = sbr.rel (%p241) target = $region48
        $region47: #{tpu_custom_call.1} parent=39 // pred_region
          %244 = dma.done [#allocation6], 10240
        $region48: #{tpu_custom_call.1} parent=39 // pred_fallthru
          _
        // Predicated region
        $region49: #{tpu_custom_call.1} parent=39 // pred_check
          %p245 = pneg %p107
        $region50: #{tpu_custom_call.1} parent=39 // pred_check_branch
          %247 = sbr.rel (%p245) target = $region52
        $region51: #{tpu_custom_call.1} parent=39 // pred_region
          %248 = dma.done [#allocation6], 4096
        $region52: #{tpu_custom_call.1} parent=39 // pred_fallthru
          _
        %s249 = sand.u32 %s31, 1
        %s250 = scalar_lea.sflag [#allocation3], %s249
        %s251 = sand.u32 %s31, 1
        %s252 = smul.addr %s251, 40
        %s253 = scalar_lea.vmem [#allocation2], %s252
        %p254 = pneg %p44
        %p255 = pneg %p41
        %p256 = pneg %p65
        %p257 = pneg %p62
        %p258 = pneg %p86
        %p259 = pneg %p83
        %p260 = pneg %p107
        %p261 = pneg %p104
        %p262 = pneg %p128
        %p263 = pneg %p125
        %p264 = pneg %p154
        %p265 = pneg %p151
        %s266 = sand.u32 %s141, 1
        %s267 = scalar_lea.sflag [#allocation4], %s266
        %s268 = sand.u32 %s141, 1
        %s269 = smul.addr %s268, 8
        %s270 = scalar_lea.vmem [#allocation8], %s269
        %v271 = vlaneseq
        %v272 = vand.u32 %v271, 127
        %v273 = vld [vmem:[%s236] sm:$0xff]
        %v274 = vlaneseq
        %v275 = vshrl.u32 %v274, 7
        %v276 = vsub.s32 0, %v275
        %v277 = vrot.slane %v273, %v276
        %279 = vbcast.lane.b32.xlu0 %v277, 256
        %v280 = vpop.permute.xlu0 %279
        %s282 = sor.u32 256, 8
        %283 = vbcast.lane.b32.xlu0 %v277, %s282
        %v284 = vpop.permute.xlu0 %283
        %v285 = vlaneseq
        %v286 = vshrl.u32 %v285, 7
        %v287 = vsub.s32 1, %v286
        %v288 = vrot.slane %v273, %v287
        %290 = vbcast.lane.b32.xlu0 %v288, 256
        %v291 = vpop.permute.xlu0 %290
        %s293 = sor.u32 256, 8
        %294 = vbcast.lane.b32.xlu0 %v288, %s293
        %v295 = vpop.permute.xlu0 %294
        %v296 = vlaneseq
        %v297 = vshrl.u32 %v296, 7
        %v298 = vsub.s32 2, %v297
        %v299 = vrot.slane %v273, %v298
        %301 = vbcast.lane.b32.xlu0 %v299, 256
        %v302 = vpop.permute.xlu0 %301
        %s304 = sor.u32 256, 8
        %305 = vbcast.lane.b32.xlu0 %v299, %s304
        %v306 = vpop.permute.xlu0 %305
        %v307 = vlaneseq
        %v308 = vshrl.u32 %v307, 7
        %v309 = vsub.s32 3, %v308
        %v310 = vrot.slane %v273, %v309
        %312 = vbcast.lane.b32.xlu0 %v310, 256
        %v313 = vpop.permute.xlu0 %312
        %s315 = sor.u32 256, 8
        %316 = vbcast.lane.b32.xlu0 %v310, %s315
        %v317 = vpop.permute.xlu0 %316
        %v318 = vlaneseq
        %v319 = vshrl.u32 %v318, 7
        %v320 = vsub.s32 4, %v319
        %v321 = vrot.slane %v273, %v320
        %323 = vbcast.lane.b32.xlu0 %v321, 256
        %v324 = vpop.permute.xlu0 %323
        %s326 = sor.u32 256, 8
        %327 = vbcast.lane.b32.xlu0 %v321, %s326
        %v328 = vpop.permute.xlu0 %327
        %v329 = vlaneseq
        %v330 = vshrl.u32 %v329, 7
        %v331 = vsub.s32 5, %v330
        %v332 = vrot.slane %v273, %v331
        %334 = vbcast.lane.b32.xlu0 %v332, 256
        %v335 = vpop.permute.xlu0 %334
        %s337 = sor.u32 256, 8
        %338 = vbcast.lane.b32.xlu0 %v332, %s337
        %v339 = vpop.permute.xlu0 %338
        %v340 = vlaneseq
        %v341 = vshrl.u32 %v340, 7
        %v342 = vsub.s32 6, %v341
        %v343 = vrot.slane %v273, %v342
        %345 = vbcast.lane.b32.xlu0 %v343, 256
        %v346 = vpop.permute.xlu0 %345
        %s348 = sor.u32 256, 8
        %349 = vbcast.lane.b32.xlu0 %v343, %s348
        %v350 = vpop.permute.xlu0 %349
        %v351 = vlaneseq
        %v352 = vshrl.u32 %v351, 7
        %v353 = vsub.s32 7, %v352
        %v354 = vrot.slane %v273, %v353
        %356 = vbcast.lane.b32.xlu0 %v354, 256
        %v357 = vpop.permute.xlu0 %356
        %s359 = sor.u32 256, 8
        %360 = vbcast.lane.b32.xlu0 %v354, %s359
        %v361 = vpop.permute.xlu0 %360
        %vm362 = vcmp.eq.s32.totalorder %v272, %v280
        %vm363 = vcmp.eq.s32.totalorder %v272, %v284
        %vm364 = vcmp.eq.s32.totalorder %v272, %v291
        %vm365 = vcmp.eq.s32.totalorder %v272, %v295
        %vm366 = vcmp.eq.s32.totalorder %v272, %v302
        %vm367 = vcmp.eq.s32.totalorder %v272, %v306
        %vm368 = vcmp.eq.s32.totalorder %v272, %v313
        %vm369 = vcmp.eq.s32.totalorder %v272, %v317
        %vm370 = vcmp.eq.s32.totalorder %v272, %v324
        %vm371 = vcmp.eq.s32.totalorder %v272, %v328
        %vm372 = vcmp.eq.s32.totalorder %v272, %v335
        %vm373 = vcmp.eq.s32.totalorder %v272, %v339
        %vm374 = vcmp.eq.s32.totalorder %v272, %v346
        %vm375 = vcmp.eq.s32.totalorder %v272, %v350
        %vm376 = vcmp.eq.s32.totalorder %v272, %v357
        %vm377 = vcmp.eq.s32.totalorder %v272, %v361
        %v378 = vsel %vm362, 1, 0
        %v379 = vsel %vm363, 1, 0
        %v380 = vsel %vm364, 1, 0
        %v381 = vsel %vm365, 1, 0
        %v382 = vsel %vm366, 1, 0
        %v383 = vsel %vm367, 1, 0
        %v384 = vsel %vm368, 1, 0
        %v385 = vsel %vm369, 1, 0
        %v386 = vsel %vm370, 1, 0
        %v387 = vsel %vm371, 1, 0
        %v388 = vsel %vm372, 1, 0
        %v389 = vsel %vm373, 1, 0
        %v390 = vsel %vm374, 1, 0
        %v391 = vsel %vm375, 1, 0
        %v392 = vsel %vm376, 1, 0
        %v393 = vsel %vm377, 1, 0
        %v394 = vcvt.s32.f32 %v378
        %v395 = vcvt.s32.f32 %v379
        %v396 = vcvt.s32.f32 %v380
        %v397 = vcvt.s32.f32 %v381
        %v398 = vcvt.s32.f32 %v382
        %v399 = vcvt.s32.f32 %v383
        %v400 = vcvt.s32.f32 %v384
        %v401 = vcvt.s32.f32 %v385
        %v402 = vcvt.s32.f32 %v386
        %v403 = vcvt.s32.f32 %v387
        %v404 = vcvt.s32.f32 %v388
        %v405 = vcvt.s32.f32 %v389
        %v406 = vcvt.s32.f32 %v390
        %v407 = vcvt.s32.f32 %v391
        %v408 = vcvt.s32.f32 %v392
        %v409 = vcvt.s32.f32 %v393
        %v410 = vld [vmem:[#allocation5] sm:$0xff]
        %v411 = vld [vmem:[#allocation5 + $0x8] sm:$0xff]
        %v412 = vld [vmem:[#allocation5 + $0x10] sm:$0xff]
        %v413 = vld [vmem:[#allocation5 + $0x18] sm:$0xff]
        %v414 = vld [vmem:[#allocation5 + $0x20] sm:$0xff]
        %v415 = vld [vmem:[#allocation5 + $0x28] sm:$0xff]
        %v416 = vld [vmem:[#allocation5 + $0x30] sm:$0xff]
        %v417 = vld [vmem:[#allocation5 + $0x38] sm:$0xff]
        %v418 = vld [vmem:[#allocation5 + $0x40] sm:$0xff]
        %v419 = vld [vmem:[#allocation5 + $0x48] sm:$0xff]
        %v420 = vld [vmem:[#allocation5 + $0x50] sm:$0xff]
        %v421 = vld [vmem:[#allocation5 + $0x58] sm:$0xff]
        %v422 = vld [vmem:[#allocation5 + $0x60] sm:$0xff]
        %v423 = vld [vmem:[#allocation5 + $0x68] sm:$0xff]
        %v424 = vld [vmem:[#allocation5 + $0x70] sm:$0xff]
        %v425 = vld [vmem:[#allocation5 + $0x78] sm:$0xff]
        %s426 = scalar_lea.vmem %s236, 8 [#allocation2]
        %v427 = vld [vmem:[%s426] sm:$0xff]
        %v428 = vlaneseq
        %v429 = vshrl.u32 %v428, 7
        %v430 = vsub.s32 0, %v429
        %v431 = vrot.slane %v427, %v430
        %433 = vbcast.lane.b32.xlu0 %v431, 256
        %v434 = vpop.permute.xlu0 %433
        %s436 = sor.u32 256, 8
        %437 = vbcast.lane.b32.xlu0 %v431, %s436
        %v438 = vpop.permute.xlu0 %437
        %v439 = vlaneseq
        %v440 = vshrl.u32 %v439, 7
        %v441 = vsub.s32 1, %v440
        %v442 = vrot.slane %v427, %v441
        %444 = vbcast.lane.b32.xlu0 %v442, 256
        %v445 = vpop.permute.xlu0 %444
        %s447 = sor.u32 256, 8
        %448 = vbcast.lane.b32.xlu0 %v442, %s447
        %v449 = vpop.permute.xlu0 %448
        %v450 = vlaneseq
        %v451 = vshrl.u32 %v450, 7
        %v452 = vsub.s32 2, %v451
        %v453 = vrot.slane %v427, %v452
        %455 = vbcast.lane.b32.xlu0 %v453, 256
        %v456 = vpop.permute.xlu0 %455
        %s458 = sor.u32 256, 8
        %459 = vbcast.lane.b32.xlu0 %v453, %s458
        %v460 = vpop.permute.xlu0 %459
        %v461 = vlaneseq
        %v462 = vshrl.u32 %v461, 7
        %v463 = vsub.s32 3, %v462
        %v464 = vrot.slane %v427, %v463
        %466 = vbcast.lane.b32.xlu0 %v464, 256
        %v467 = vpop.permute.xlu0 %466
        %s469 = sor.u32 256, 8
        %470 = vbcast.lane.b32.xlu0 %v464, %s469
        %v471 = vpop.permute.xlu0 %470
        %v472 = vlaneseq
        %v473 = vshrl.u32 %v472, 7
        %v474 = vsub.s32 4, %v473
        %v475 = vrot.slane %v427, %v474
        %477 = vbcast.lane.b32.xlu0 %v475, 256
        %v478 = vpop.permute.xlu0 %477
        %s480 = sor.u32 256, 8
        %481 = vbcast.lane.b32.xlu0 %v475, %s480
        %v482 = vpop.permute.xlu0 %481
        %v483 = vlaneseq
        %v484 = vshrl.u32 %v483, 7
        %v485 = vsub.s32 5, %v484
        %v486 = vrot.slane %v427, %v485
        %488 = vbcast.lane.b32.xlu0 %v486, 256
        %v489 = vpop.permute.xlu0 %488
        %s491 = sor.u32 256, 8
        %492 = vbcast.lane.b32.xlu0 %v486, %s491
        %v493 = vpop.permute.xlu0 %492
        %v494 = vlaneseq
        %v495 = vshrl.u32 %v494, 7
        %v496 = vsub.s32 6, %v495
        %v497 = vrot.slane %v427, %v496
        %499 = vbcast.lane.b32.xlu0 %v497, 256
        %v500 = vpop.permute.xlu0 %499
        %s502 = sor.u32 256, 8
        %503 = vbcast.lane.b32.xlu0 %v497, %s502
        %v504 = vpop.permute.xlu0 %503
        %v505 = vlaneseq
        %v506 = vshrl.u32 %v505, 7
        %v507 = vsub.s32 7, %v506
        %v508 = vrot.slane %v427, %v507
        %510 = vbcast.lane.b32.xlu0 %v508, 256
        %v511 = vpop.permute.xlu0 %510
        %s513 = sor.u32 256, 8
        %514 = vbcast.lane.b32.xlu0 %v508, %s513
        %v515 = vpop.permute.xlu0 %514
        %vm516 = vcmp.eq.s32.totalorder %v272, %v434
        %vm517 = vcmp.eq.s32.totalorder %v272, %v438
        %vm518 = vcmp.eq.s32.totalorder %v272, %v445
        %vm519 = vcmp.eq.s32.totalorder %v272, %v449
        %vm520 = vcmp.eq.s32.totalorder %v272, %v456
        %vm521 = vcmp.eq.s32.totalorder %v272, %v460
        %vm522 = vcmp.eq.s32.totalorder %v272, %v467
        %vm523 = vcmp.eq.s32.totalorder %v272, %v471
        %vm524 = vcmp.eq.s32.totalorder %v272, %v478
        %vm525 = vcmp.eq.s32.totalorder %v272, %v482
        %vm526 = vcmp.eq.s32.totalorder %v272, %v489
        %vm527 = vcmp.eq.s32.totalorder %v272, %v493
        %vm528 = vcmp.eq.s32.totalorder %v272, %v500
        %vm529 = vcmp.eq.s32.totalorder %v272, %v504
        %vm530 = vcmp.eq.s32.totalorder %v272, %v511
        %vm531 = vcmp.eq.s32.totalorder %v272, %v515
        %v532 = vsel %vm516, 1, 0
        %v533 = vsel %vm517, 1, 0
        %v534 = vsel %vm518, 1, 0
        %v535 = vsel %vm519, 1, 0
        %v536 = vsel %vm520, 1, 0
        %v537 = vsel %vm521, 1, 0
        %v538 = vsel %vm522, 1, 0
        %v539 = vsel %vm523, 1, 0
        %v540 = vsel %vm524, 1, 0
        %v541 = vsel %vm525, 1, 0
        %v542 = vsel %vm526, 1, 0
        %v543 = vsel %vm527, 1, 0
        %v544 = vsel %vm528, 1, 0
        %v545 = vsel %vm529, 1, 0
        %v546 = vsel %vm530, 1, 0
        %v547 = vsel %vm531, 1, 0
        %v548 = vcvt.s32.f32 %v532
        %v549 = vcvt.s32.f32 %v533
        %v550 = vcvt.s32.f32 %v534
        %v551 = vcvt.s32.f32 %v535
        %v552 = vcvt.s32.f32 %v536
        %v553 = vcvt.s32.f32 %v537
        %v554 = vcvt.s32.f32 %v538
        %v555 = vcvt.s32.f32 %v539
        %v556 = vcvt.s32.f32 %v540
        %v557 = vcvt.s32.f32 %v541
        %v558 = vcvt.s32.f32 %v542
        %v559 = vcvt.s32.f32 %v543
        %v560 = vcvt.s32.f32 %v544
        %v561 = vcvt.s32.f32 %v545
        %v562 = vcvt.s32.f32 %v546
        %v563 = vcvt.s32.f32 %v547
        %s564 = scalar_lea.vmem [#allocation5], 128
        %v565 = vld [vmem:[%s564] sm:$0xff]
        %v566 = vld [vmem:[%s564 + $0x8] sm:$0xff]
        %v567 = vld [vmem:[%s564 + $0x10] sm:$0xff]
        %v568 = vld [vmem:[%s564 + $0x18] sm:$0xff]
        %v569 = vld [vmem:[%s564 + $0x20] sm:$0xff]
        %v570 = vld [vmem:[%s564 + $0x28] sm:$0xff]
        %v571 = vld [vmem:[%s564 + $0x30] sm:$0xff]
        %v572 = vld [vmem:[%s564 + $0x38] sm:$0xff]
        %v573 = vld [vmem:[%s564 + $0x40] sm:$0xff]
        %v574 = vld [vmem:[%s564 + $0x48] sm:$0xff]
        %v575 = vld [vmem:[%s564 + $0x50] sm:$0xff]
        %v576 = vld [vmem:[%s564 + $0x58] sm:$0xff]
        %v577 = vld [vmem:[%s564 + $0x60] sm:$0xff]
        %v578 = vld [vmem:[%s564 + $0x68] sm:$0xff]
        %v579 = vld [vmem:[%s564 + $0x70] sm:$0xff]
        %v580 = vld [vmem:[%s564 + $0x78] sm:$0xff]
        %581 = vmatprep.subr.mxu0 0.0
        %582 = vmatpush1.msra.mxu0 %v565
        %583 = vmatprep.subr.mxu0 0.0
        %584 = vmatpush1.msra.mxu0 %v566
        %585 = vmatprep.subr.mxu0 0.0
        %586 = vmatpush1.msra.mxu0 %v567
        %587 = vmatprep.subr.mxu0 0.0
        %588 = vmatpush1.msra.mxu0 %v568
        %589 = vmatprep.subr.mxu0 0.0
        %590 = vmatpush1.msra.mxu0 %v569
        %591 = vmatprep.subr.mxu0 0.0
        %592 = vmatpush1.msra.mxu0 %v570
        %593 = vmatprep.subr.mxu0 0.0
        %594 = vmatpush1.msra.mxu0 %v571
        %595 = vmatprep.subr.mxu0 0.0
        %596 = vmatpush1.msra.mxu0 %v572
        %597 = vmatprep.subr.mxu0 0.0
        %598 = vmatpush1.msra.mxu0 %v573
        %599 = vmatprep.subr.mxu0 0.0
        %600 = vmatpush1.msra.mxu0 %v574
        %601 = vmatprep.subr.mxu0 0.0
        %602 = vmatpush1.msra.mxu0 %v575
        %603 = vmatprep.subr.mxu0 0.0
        %604 = vmatpush1.msra.mxu0 %v576
        %605 = vmatprep.subr.mxu0 0.0
        %606 = vmatpush1.msra.mxu0 %v577
        %607 = vmatprep.subr.mxu0 0.0
        %608 = vmatpush1.msra.mxu0 %v578
        %609 = vmatprep.subr.mxu0 0.0
        %610 = vmatpush1.msra.mxu0 %v579
        %611 = vmatprep.subr.mxu0 0.0
        %612 = vmatpush1.msra.mxu0 %v580
        %613 = vmatprep.subr.mxu0 0.0
        %614 = vmatpush1.msra.mxu0 0.0
        %615 = vmatprep.subr.mxu0 0.0
        %616 = vmatpush1.msra.mxu0 0.0
        %617 = vmatprep.subr.mxu0 0.0
        %618 = vmatpush1.msra.mxu0 0.0
        %619 = vmatprep.subr.mxu0 0.0
        %620 = vmatpush1.msra.mxu0 0.0
        %621 = vmatprep.subr.mxu0 0.0
        %622 = vmatpush1.msra.mxu0 0.0
        %623 = vmatprep.subr.mxu0 0.0
        %624 = vmatpush1.msra.mxu0 0.0
        %625 = vmatprep.subr.mxu0 0.0
        %626 = vmatpush1.msra.mxu0 0.0
        %627 = vmatprep.subr.mxu0 0.0
        %628 = vmatpush1.msra.mxu0 0.0
        %629 = vmatprep.subr.mxu0 0.0
        %630 = vmatpush1.msra.mxu0 0.0
        %631 = vmatprep.subr.mxu0 0.0
        %632 = vmatpush1.msra.mxu0 0.0
        %633 = vmatprep.subr.mxu0 0.0
        %634 = vmatpush1.msra.mxu0 0.0
        %635 = vmatprep.subr.mxu0 0.0
        %636 = vmatpush1.msra.mxu0 0.0
        %637 = vmatprep.subr.mxu0 0.0
        %638 = vmatpush1.msra.mxu0 0.0
        %639 = vmatprep.subr.mxu0 0.0
        %640 = vmatpush1.msra.mxu0 0.0
        %641 = vmatprep.subr.mxu0 0.0
        %642 = vmatpush1.msra.mxu0 0.0
        %643 = vmatprep.subr.mxu0 0.0
        %644 = vmatpush1.msra.mxu0 0.0
        %645 = vmatprep.mubr.f32.mxu0 0.0
        %646 = vmatmul.mubr.f32.gmra.mrb[0].mxu0 %v548
        %v647 = vpop.f32.mrb[0].mxu0
        %v648 = vadd.f32 0.0, %v647
        %v649 = vpop.f32.mrb[0].mxu0
        %650 = vmatprep.mubr.f32.mxu0 0.0
        %651 = vmatmul.mubr.f32.gmra.mrb[0].mxu0 %v549
        %v652 = vpop.f32.mrb[0].mxu0
        %v653 = vadd.f32 0.0, %v652
        %v654 = vpop.f32.mrb[0].mxu0
        %655 = vmatprep.mubr.f32.mxu0 0.0
        %656 = vmatmul.mubr.f32.gmra.mrb[0].mxu0 %v550
        %v657 = vpop.f32.mrb[0].mxu0
        %v658 = vadd.f32 0.0, %v657
        %v659 = vpop.f32.mrb[0].mxu0
        %660 = vmatprep.mubr.f32.mxu0 0.0
        %661 = vmatmul.mubr.f32.gmra.mrb[0].mxu0 %v551
        %v662 = vpop.f32.mrb[0].mxu0
        %v663 = vadd.f32 0.0, %v662
        %v664 = vpop.f32.mrb[0].mxu0
        %665 = vmatprep.mubr.f32.mxu0 0.0
        %666 = vmatmul.mubr.f32.gmra.mrb[0].mxu0 %v552
        %v667 = vpop.f32.mrb[0].mxu0
        %v668 = vadd.f32 0.0, %v667
        %v669 = vpop.f32.mrb[0].mxu0
        %670 = vmatprep.mubr.f32.mxu0 0.0
        %671 = vmatmul.mubr.f32.gmra.mrb[0].mxu0 %v553
        %v672 = vpop.f32.mrb[0].mxu0
        %v673 = vadd.f32 0.0, %v672
        %v674 = vpop.f32.mrb[0].mxu0
        %675 = vmatprep.mubr.f32.mxu0 0.0
        %676 = vmatmul.mubr.f32.gmra.mrb[0].mxu0 %v554
        %v677 = vpop.f32.mrb[0].mxu0
        %v678 = vadd.f32 0.0, %v677
        %v679 = vpop.f32.mrb[0].mxu0
        %680 = vmatprep.mubr.f32.mxu0 0.0
        %681 = vmatmul.mubr.f32.gmra.mrb[0].mxu0 %v555
        %v682 = vpop.f32.mrb[0].mxu0
        %v683 = vadd.f32 0.0, %v682
        %v684 = vpop.f32.mrb[0].mxu0
        %685 = vmatprep.mubr.f32.mxu0 0.0
        %686 = vmatmul.mubr.f32.gmra.mrb[0].mxu0 %v556
        %v687 = vpop.f32.mrb[0].mxu0
        %v688 = vadd.f32 0.0, %v687
        %v689 = vpop.f32.mrb[0].mxu0
        %690 = vmatprep.mubr.f32.mxu0 0.0
        %691 = vmatmul.mubr.f32.gmra.mrb[0].mxu0 %v557
        %v692 = vpop.f32.mrb[0].mxu0
        %v693 = vadd.f32 0.0, %v692
        %v694 = vpop.f32.mrb[0].mxu0
        %695 = vmatprep.mubr.f32.mxu0 0.0
        %696 = vmatmul.mubr.f32.gmra.mrb[0].mxu0 %v558
        %v697 = vpop.f32.mrb[0].mxu0
        %v698 = vadd.f32 0.0, %v697
        %v699 = vpop.f32.mrb[0].mxu0
        %700 = vmatprep.mubr.f32.mxu0 0.0
        %701 = vmatmul.mubr.f32.gmra.mrb[0].mxu0 %v559
        %v702 = vpop.f32.mrb[0].mxu0
        %v703 = vadd.f32 0.0, %v702
        %v704 = vpop.f32.mrb[0].mxu0
        %705 = vmatprep.mubr.f32.mxu0 0.0
        %706 = vmatmul.mubr.f32.gmra.mrb[0].mxu0 %v560
        %v707 = vpop.f32.mrb[0].mxu0
        %v708 = vadd.f32 0.0, %v707
        %v709 = vpop.f32.mrb[0].mxu0
        %710 = vmatprep.mubr.f32.mxu0 0.0
        %711 = vmatmul.mubr.f32.gmra.mrb[0].mxu0 %v561
        %v712 = vpop.f32.mrb[0].mxu0
        %v713 = vadd.f32 0.0, %v712
        %v714 = vpop.f32.mrb[0].mxu0
        %715 = vmatprep.mubr.f32.mxu0 0.0
        %716 = vmatmul.mubr.f32.gmra.mrb[0].mxu0 %v562
        %v717 = vpop.f32.mrb[0].mxu0
        %v718 = vadd.f32 0.0, %v717
        %v719 = vpop.f32.mrb[0].mxu0
        %720 = vmatprep.mubr.f32.mxu0 0.0
        %721 = vmatmul.mubr.f32.gmra.mrb[0].mxu0 %v563
        %v722 = vpop.f32.mrb[0].mxu0
        %v723 = vadd.f32 0.0, %v722
        %v724 = vpop.f32.mrb[0].mxu0
        %725 = vdwg.mxu0
        %726 = vmatprep.subr.mxu0 0.0
        %727 = vmatpush1.msra.mxu0 %v410
        %728 = vmatprep.subr.mxu0 0.0
        %729 = vmatpush1.msra.mxu0 %v411
        %730 = vmatprep.subr.mxu0 0.0
        %731 = vmatpush1.msra.mxu0 %v412
        %732 = vmatprep.subr.mxu0 0.0
        %733 = vmatpush1.msra.mxu0 %v413
        %734 = vmatprep.subr.mxu0 0.0
        %735 = vmatpush1.msra.mxu0 %v414
        %736 = vmatprep.subr.mxu0 0.0
        %737 = vmatpush1.msra.mxu0 %v415
        %738 = vmatprep.subr.mxu0 0.0
        %739 = vmatpush1.msra.mxu0 %v416
        %740 = vmatprep.subr.mxu0 0.0
        %741 = vmatpush1.msra.mxu0 %v417
        %742 = vmatprep.subr.mxu0 0.0
        %743 = vmatpush1.msra.mxu0 %v418
        %744 = vmatprep.subr.mxu0 0.0
        %745 = vmatpush1.msra.mxu0 %v419
        %746 = vmatprep.subr.mxu0 0.0
        %747 = vmatpush1.msra.mxu0 %v420
        %748 = vmatprep.subr.mxu0 0.0
        %749 = vmatpush1.msra.mxu0 %v421
        %750 = vmatprep.subr.mxu0 0.0
        %751 = vmatpush1.msra.mxu0 %v422
        %752 = vmatprep.subr.mxu0 0.0
        %753 = vmatpush1.msra.mxu0 %v423
        %754 = vmatprep.subr.mxu0 0.0
        %755 = vmatpush1.msra.mxu0 %v424
        %756 = vmatprep.subr.mxu0 0.0
        %757 = vmatpush1.msra.mxu0 %v425
        %758 = vmatprep.subr.mxu0 0.0
        %759 = vmatpush1.msra.mxu0 0.0
        %760 = vmatprep.subr.mxu0 0.0
        %761 = vmatpush1.msra.mxu0 0.0
        %762 = vmatprep.subr.mxu0 0.0
        %763 = vmatpush1.msra.mxu0 0.0
        %764 = vmatprep.subr.mxu0 0.0
        %765 = vmatpush1.msra.mxu0 0.0
        %766 = vmatprep.subr.mxu0 0.0
        %767 = vmatpush1.msra.mxu0 0.0
        %768 = vmatprep.subr.mxu0 0.0
        %769 = vmatpush1.msra.mxu0 0.0
        %770 = vmatprep.subr.mxu0 0.0
        %771 = vmatpush1.msra.mxu0 0.0
        %772 = vmatprep.subr.mxu0 0.0
        %773 = vmatpush1.msra.mxu0 0.0
        %774 = vmatprep.subr.mxu0 0.0
        %775 = vmatpush1.msra.mxu0 0.0
        %776 = vmatprep.subr.mxu0 0.0
        %777 = vmatpush1.msra.mxu0 0.0
        %778 = vmatprep.subr.mxu0 0.0
        %779 = vmatpush1.msra.mxu0 0.0
        %780 = vmatprep.subr.mxu0 0.0
        %781 = vmatpush1.msra.mxu0 0.0
        %782 = vmatprep.subr.mxu0 0.0
        %783 = vmatpush1.msra.mxu0 0.0
        %784 = vmatprep.subr.mxu0 0.0
        %785 = vmatpush1.msra.mxu0 0.0
        %786 = vmatprep.subr.mxu0 0.0
        %787 = vmatpush1.msra.mxu0 0.0
        %788 = vmatprep.subr.mxu0 0.0
        %789 = vmatpush1.msra.mxu0 0.0
        %790 = vmatprep.mubr.f32.mxu0 0.0
        %791 = vmatmul.mubr.f32.gmra.mrb[0].mxu0 %v394
        %v792 = vpop.f32.mrb[0].mxu0
        %v793 = vadd.f32 %v648, %v792
        %v794 = vpop.f32.mrb[0].mxu0
        %795 = vmatprep.mubr.f32.mxu0 0.0
        %796 = vmatmul.mubr.f32.gmra.mrb[0].mxu0 %v395
        %v797 = vpop.f32.mrb[0].mxu0
        %v798 = vadd.f32 %v653, %v797
        %v799 = vpop.f32.mrb[0].mxu0
        %800 = vmatprep.mubr.f32.mxu0 0.0
        %801 = vmatmul.mubr.f32.gmra.mrb[0].mxu0 %v396
        %v802 = vpop.f32.mrb[0].mxu0
        %v803 = vadd.f32 %v658, %v802
        %v804 = vpop.f32.mrb[0].mxu0
        %805 = vmatprep.mubr.f32.mxu0 0.0
        %806 = vmatmul.mubr.f32.gmra.mrb[0].mxu0 %v397
        %v807 = vpop.f32.mrb[0].mxu0
        %v808 = vadd.f32 %v663, %v807
        %v809 = vpop.f32.mrb[0].mxu0
        %810 = vmatprep.mubr.f32.mxu0 0.0
        %811 = vmatmul.mubr.f32.gmra.mrb[0].mxu0 %v398
        %v812 = vpop.f32.mrb[0].mxu0
        %v813 = vadd.f32 %v668, %v812
        %v814 = vpop.f32.mrb[0].mxu0
        %815 = vmatprep.mubr.f32.mxu0 0.0
        %816 = vmatmul.mubr.f32.gmra.mrb[0].mxu0 %v399
        %v817 = vpop.f32.mrb[0].mxu0
        %v818 = vadd.f32 %v673, %v817
        %v819 = vpop.f32.mrb[0].mxu0
        %820 = vmatprep.mubr.f32.mxu0 0.0
        %821 = vmatmul.mubr.f32.gmra.mrb[0].mxu0 %v400
        %v822 = vpop.f32.mrb[0].mxu0
        %v823 = vadd.f32 %v678, %v822
        %v824 = vpop.f32.mrb[0].mxu0
        %825 = vmatprep.mubr.f32.mxu0 0.0
        %826 = vmatmul.mubr.f32.gmra.mrb[0].mxu0 %v401
        %v827 = vpop.f32.mrb[0].mxu0
        %v828 = vadd.f32 %v683, %v827
        %v829 = vpop.f32.mrb[0].mxu0
        %830 = vmatprep.mubr.f32.mxu0 0.0
        %831 = vmatmul.mubr.f32.gmra.mrb[0].mxu0 %v402
        %v832 = vpop.f32.mrb[0].mxu0
        %v833 = vadd.f32 %v688, %v832
        %v834 = vpop.f32.mrb[0].mxu0
        %835 = vmatprep.mubr.f32.mxu0 0.0
        %836 = vmatmul.mubr.f32.gmra.mrb[0].mxu0 %v403
        %v837 = vpop.f32.mrb[0].mxu0
        %v838 = vadd.f32 %v693, %v837
        %v839 = vpop.f32.mrb[0].mxu0
        %840 = vmatprep.mubr.f32.mxu0 0.0
        %841 = vmatmul.mubr.f32.gmra.mrb[0].mxu0 %v404
        %v842 = vpop.f32.mrb[0].mxu0
        %v843 = vadd.f32 %v698, %v842
        %v844 = vpop.f32.mrb[0].mxu0
        %845 = vmatprep.mubr.f32.mxu0 0.0
        %846 = vmatmul.mubr.f32.gmra.mrb[0].mxu0 %v405
        %v847 = vpop.f32.mrb[0].mxu0
        %v848 = vadd.f32 %v703, %v847
        %v849 = vpop.f32.mrb[0].mxu0
        %850 = vmatprep.mubr.f32.mxu0 0.0
        %851 = vmatmul.mubr.f32.gmra.mrb[0].mxu0 %v406
        %v852 = vpop.f32.mrb[0].mxu0
        %v853 = vadd.f32 %v708, %v852
        %v854 = vpop.f32.mrb[0].mxu0
        %855 = vmatprep.mubr.f32.mxu0 0.0
        %856 = vmatmul.mubr.f32.gmra.mrb[0].mxu0 %v407
        %v857 = vpop.f32.mrb[0].mxu0
        %v858 = vadd.f32 %v713, %v857
        %v859 = vpop.f32.mrb[0].mxu0
        %860 = vmatprep.mubr.f32.mxu0 0.0
        %861 = vmatmul.mubr.f32.gmra.mrb[0].mxu0 %v408
        %v862 = vpop.f32.mrb[0].mxu0
        %v863 = vadd.f32 %v718, %v862
        %v864 = vpop.f32.mrb[0].mxu0
        %865 = vmatprep.mubr.f32.mxu0 0.0
        %866 = vmatmul.mubr.f32.gmra.mrb[0].mxu0 %v409
        %v867 = vpop.f32.mrb[0].mxu0
        %v868 = vadd.f32 %v723, %v867
        %v869 = vpop.f32.mrb[0].mxu0
        %870 = vdwg.mxu0
        %s871 = scalar_lea.vmem %s236, 16 [#allocation2]
        %v872 = vld [vmem:[%s871] sm:$0xff]
        %v873 = vlaneseq
        %v874 = vshrl.u32 %v873, 7
        %v875 = vsub.s32 0, %v874
        %v876 = vrot.slane %v872, %v875
        %878 = vbcast.lane.b32.xlu0 %v876, 256
        %v879 = vpop.permute.xlu0 %878
        %s881 = sor.u32 256, 8
        %882 = vbcast.lane.b32.xlu0 %v876, %s881
        %v883 = vpop.permute.xlu0 %882
        %v884 = vlaneseq
        %v885 = vshrl.u32 %v884, 7
        %v886 = vsub.s32 1, %v885
        %v887 = vrot.slane %v872, %v886
        %889 = vbcast.lane.b32.xlu0 %v887, 256
        %v890 = vpop.permute.xlu0 %889
        %s892 = sor.u32 256, 8
        %893 = vbcast.lane.b32.xlu0 %v887, %s892
        %v894 = vpop.permute.xlu0 %893
        %v895 = vlaneseq
        %v896 = vshrl.u32 %v895, 7
        %v897 = vsub.s32 2, %v896
        %v898 = vrot.slane %v872, %v897
        %900 = vbcast.lane.b32.xlu0 %v898, 256
        %v901 = vpop.permute.xlu0 %900
        %s903 = sor.u32 256, 8
        %904 = vbcast.lane.b32.xlu0 %v898, %s903
        %v905 = vpop.permute.xlu0 %904
        %v906 = vlaneseq
        %v907 = vshrl.u32 %v906, 7
        %v908 = vsub.s32 3, %v907
        %v909 = vrot.slane %v872, %v908
        %911 = vbcast.lane.b32.xlu0 %v909, 256
        %v912 = vpop.permute.xlu0 %911
        %s914 = sor.u32 256, 8
        %915 = vbcast.lane.b32.xlu0 %v909, %s914
        %v916 = vpop.permute.xlu0 %915
        %v917 = vlaneseq
        %v918 = vshrl.u32 %v917, 7
        %v919 = vsub.s32 4, %v918
        %v920 = vrot.slane %v872, %v919
        %922 = vbcast.lane.b32.xlu0 %v920, 256
        %v923 = vpop.permute.xlu0 %922
        %s925 = sor.u32 256, 8
        %926 = vbcast.lane.b32.xlu0 %v920, %s925
        %v927 = vpop.permute.xlu0 %926
        %v928 = vlaneseq
        %v929 = vshrl.u32 %v928, 7
        %v930 = vsub.s32 5, %v929
        %v931 = vrot.slane %v872, %v930
        %933 = vbcast.lane.b32.xlu0 %v931, 256
        %v934 = vpop.permute.xlu0 %933
        %s936 = sor.u32 256, 8
        %937 = vbcast.lane.b32.xlu0 %v931, %s936
        %v938 = vpop.permute.xlu0 %937
        %v939 = vlaneseq
        %v940 = vshrl.u32 %v939, 7
        %v941 = vsub.s32 6, %v940
        %v942 = vrot.slane %v872, %v941
        %944 = vbcast.lane.b32.xlu0 %v942, 256
        %v945 = vpop.permute.xlu0 %944
        %s947 = sor.u32 256, 8
        %948 = vbcast.lane.b32.xlu0 %v942, %s947
        %v949 = vpop.permute.xlu0 %948
        %v950 = vlaneseq
        %v951 = vshrl.u32 %v950, 7
        %v952 = vsub.s32 7, %v951
        %v953 = vrot.slane %v872, %v952
        %955 = vbcast.lane.b32.xlu0 %v953, 256
        %v956 = vpop.permute.xlu0 %955
        %s958 = sor.u32 256, 8
        %959 = vbcast.lane.b32.xlu0 %v953, %s958
        %v960 = vpop.permute.xlu0 %959
        %vm961 = vcmp.eq.s32.totalorder %v272, %v879
        %vm962 = vcmp.eq.s32.totalorder %v272, %v883
        %vm963 = vcmp.eq.s32.totalorder %v272, %v890
        %vm964 = vcmp.eq.s32.totalorder %v272, %v894
        %vm965 = vcmp.eq.s32.totalorder %v272, %v901
        %vm966 = vcmp.eq.s32.totalorder %v272, %v905
        %vm967 = vcmp.eq.s32.totalorder %v272, %v912
        %vm968 = vcmp.eq.s32.totalorder %v272, %v916
        %vm969 = vcmp.eq.s32.totalorder %v272, %v923
        %vm970 = vcmp.eq.s32.totalorder %v272, %v927
        %vm971 = vcmp.eq.s32.totalorder %v272, %v934
        %vm972 = vcmp.eq.s32.totalorder %v272, %v938
        %vm973 = vcmp.eq.s32.totalorder %v272, %v945
        %vm974 = vcmp.eq.s32.totalorder %v272, %v949
        %vm975 = vcmp.eq.s32.totalorder %v272, %v956
        %vm976 = vcmp.eq.s32.totalorder %v272, %v960
        %v977 = vsel %vm961, 1, 0
        %v978 = vsel %vm962, 1, 0
        %v979 = vsel %vm963, 1, 0
        %v980 = vsel %vm964, 1, 0
        %v981 = vsel %vm965, 1, 0
        %v982 = vsel %vm966, 1, 0
        %v983 = vsel %vm967, 1, 0
        %v984 = vsel %vm968, 1, 0
        %v985 = vsel %vm969, 1, 0
        %v986 = vsel %vm970, 1, 0
        %v987 = vsel %vm971, 1, 0
        %v988 = vsel %vm972, 1, 0
        %v989 = vsel %vm973, 1, 0
        %v990 = vsel %vm974, 1, 0
        %v991 = vsel %vm975, 1, 0
        %v992 = vsel %vm976, 1, 0
        %v993 = vcvt.s32.f32 %v977
        %v994 = vcvt.s32.f32 %v978
        %v995 = vcvt.s32.f32 %v979
        %v996 = vcvt.s32.f32 %v980
        %v997 = vcvt.s32.f32 %v981
        %v998 = vcvt.s32.f32 %v982
        %v999 = vcvt.s32.f32 %v983
        %v1000 = vcvt.s32.f32 %v984
        %v1001 = vcvt.s32.f32 %v985
        %v1002 = vcvt.s32.f32 %v986
        %v1003 = vcvt.s32.f32 %v987
        %v1004 = vcvt.s32.f32 %v988
        %v1005 = vcvt.s32.f32 %v989
        %v1006 = vcvt.s32.f32 %v990
        %v1007 = vcvt.s32.f32 %v991
        %v1008 = vcvt.s32.f32 %v992
        %s1009 = scalar_lea.vmem [#allocation5], 256
        %v1010 = vld [vmem:[%s1009] sm:$0xff]
        %v1011 = vld [vmem:[%s1009 + $0x8] sm:$0xff]
        %v1012 = vld [vmem:[%s1009 + $0x10] sm:$0xff]
        %v1013 = vld [vmem:[%s1009 + $0x18] sm:$0xff]
        %v1014 = vld [vmem:[%s1009 + $0x20] sm:$0xff]
        %v1015 = vld [vmem:[%s1009 + $0x28] sm:$0xff]
        %v1016 = vld [vmem:[%s1009 + $0x30] sm:$0xff]
        %v1017 = vld [vmem:[%s1009 + $0x38] sm:$0xff]
        %v1018 = vld [vmem:[%s1009 + $0x40] sm:$0xff]
        %v1019 = vld [vmem:[%s1009 + $0x48] sm:$0xff]
        %v1020 = vld [vmem:[%s1009 + $0x50] sm:$0xff]
        %v1021 = vld [vmem:[%s1009 + $0x58] sm:$0xff]
        %v1022 = vld [vmem:[%s1009 + $0x60] sm:$0xff]
        %v1023 = vld [vmem:[%s1009 + $0x68] sm:$0xff]
        %v1024 = vld [vmem:[%s1009 + $0x70] sm:$0xff]
        %v1025 = vld [vmem:[%s1009 + $0x78] sm:$0xff]
        %1026 = vmatprep.subr.mxu0 0.0
        %1027 = vmatpush1.msra.mxu0 %v1010
        %1028 = vmatprep.subr.mxu0 0.0
        %1029 = vmatpush1.msra.mxu0 %v1011
        %1030 = vmatprep.subr.mxu0 0.0
        %1031 = vmatpush1.msra.mxu0 %v1012
        %1032 = vmatprep.subr.mxu0 0.0
        %1033 = vmatpush1.msra.mxu0 %v1013
        %1034 = vmatprep.subr.mxu0 0.0
        %1035 = vmatpush1.msra.mxu0 %v1014
        %1036 = vmatprep.subr.mxu0 0.0
        %1037 = vmatpush1.msra.mxu0 %v1015
        %1038 = vmatprep.subr.mxu0 0.0
        %1039 = vmatpush1.msra.mxu0 %v1016
        %1040 = vmatprep.subr.mxu0 0.0
        %1041 = vmatpush1.msra.mxu0 %v1017
        %1042 = vmatprep.subr.mxu0 0.0
        %1043 = vmatpush1.msra.mxu0 %v1018
        %1044 = vmatprep.subr.mxu0 0.0
        %1045 = vmatpush1.msra.mxu0 %v1019
        %1046 = vmatprep.subr.mxu0 0.0
        %1047 = vmatpush1.msra.mxu0 %v1020
        %1048 = vmatprep.subr.mxu0 0.0
        %1049 = vmatpush1.msra.mxu0 %v1021
        %1050 = vmatprep.subr.mxu0 0.0
        %1051 = vmatpush1.msra.mxu0 %v1022
        %1052 = vmatprep.subr.mxu0 0.0
        %1053 = vmatpush1.msra.mxu0 %v1023
        %1054 = vmatprep.subr.mxu0 0.0
        %1055 = vmatpush1.msra.mxu0 %v1024
        %1056 = vmatprep.subr.mxu0 0.0
        %1057 = vmatpush1.msra.mxu0 %v1025
        %1058 = vmatprep.subr.mxu0 0.0
        %1059 = vmatpush1.msra.mxu0 0.0
        %1060 = vmatprep.subr.mxu0 0.0
        %1061 = vmatpush1.msra.mxu0 0.0
        %1062 = vmatprep.subr.mxu0 0.0
        %1063 = vmatpush1.msra.mxu0 0.0
        %1064 = vmatprep.subr.mxu0 0.0
        %1065 = vmatpush1.msra.mxu0 0.0
        %1066 = vmatprep.subr.mxu0 0.0
        %1067 = vmatpush1.msra.mxu0 0.0
        %1068 = vmatprep.subr.mxu0 0.0
        %1069 = vmatpush1.msra.mxu0 0.0
        %1070 = vmatprep.subr.mxu0 0.0
        %1071 = vmatpush1.msra.mxu0 0.0
        %1072 = vmatprep.subr.mxu0 0.0
        %1073 = vmatpush1.msra.mxu0 0.0
        %1074 = vmatprep.subr.mxu0 0.0
        %1075 = vmatpush1.msra.mxu0 0.0
        %1076 = vmatprep.subr.mxu0 0.0
        %1077 = vmatpush1.msra.mxu0 0.0
        %1078 = vmatprep.subr.mxu0 0.0
        %1079 = vmatpush1.msra.mxu0 0.0
        %1080 = vmatprep.subr.mxu0 0.0
        %1081 = vmatpush1.msra.mxu0 0.0
        %1082 = vmatprep.subr.mxu0 0.0
        %1083 = vmatpush1.msra.mxu0 0.0
        %1084 = vmatprep.subr.mxu0 0.0
        %1085 = vmatpush1.msra.mxu0 0.0
        %1086 = vmatprep.subr.mxu0 0.0
        %1087 = vmatpush1.msra.mxu0 0.0
        %1088 = vmatprep.subr.mxu0 0.0
        %1089 = vmatpush1.msra.mxu0 0.0
        %1090 = vmatprep.mubr.f32.mxu0 0.0
        %1091 = vmatmul.mubr.f32.gmra.mrb[0].mxu0 %v993
        %v1092 = vpop.f32.mrb[0].mxu0
        %v1093 = vadd.f32 0.0, %v1092
        %v1094 = vpop.f32.mrb[0].mxu0
        %1095 = vmatprep.mubr.f32.mxu0 0.0
        %1096 = vmatmul.mubr.f32.gmra.mrb[0].mxu0 %v994
        %v1097 = vpop.f32.mrb[0].mxu0
        %v1098 = vadd.f32 0.0, %v1097
        %v1099 = vpop.f32.mrb[0].mxu0
        %1100 = vmatprep.mubr.f32.mxu0 0.0
        %1101 = vmatmul.mubr.f32.gmra.mrb[0].mxu0 %v995
        %v1102 = vpop.f32.mrb[0].mxu0
        %v1103 = vadd.f32 0.0, %v1102
        %v1104 = vpop.f32.mrb[0].mxu0
        %1105 = vmatprep.mubr.f32.mxu0 0.0
        %1106 = vmatmul.mubr.f32.gmra.mrb[0].mxu0 %v996
        %v1107 = vpop.f32.mrb[0].mxu0
        %v1108 = vadd.f32 0.0, %v1107
        %v1109 = vpop.f32.mrb[0].mxu0
        %1110 = vmatprep.mubr.f32.mxu0 0.0
        %1111 = vmatmul.mubr.f32.gmra.mrb[0].mxu0 %v997
        %v1112 = vpop.f32.mrb[0].mxu0
        %v1113 = vadd.f32 0.0, %v1112
        %v1114 = vpop.f32.mrb[0].mxu0
        %1115 = vmatprep.mubr.f32.mxu0 0.0
        %1116 = vmatmul.mubr.f32.gmra.mrb[0].mxu0 %v998
        %v1117 = vpop.f32.mrb[0].mxu0
        %v1118 = vadd.f32 0.0, %v1117
        %v1119 = vpop.f32.mrb[0].mxu0
        %1120 = vmatprep.mubr.f32.mxu0 0.0
        %1121 = vmatmul.mubr.f32.gmra.mrb[0].mxu0 %v999
        %v1122 = vpop.f32.mrb[0].mxu0
        %v1123 = vadd.f32 0.0, %v1122
        %v1124 = vpop.f32.mrb[0].mxu0
        %1125 = vmatprep.mubr.f32.mxu0 0.0
        %1126 = vmatmul.mubr.f32.gmra.mrb[0].mxu0 %v1000
        %v1127 = vpop.f32.mrb[0].mxu0
        %v1128 = vadd.f32 0.0, %v1127
        %v1129 = vpop.f32.mrb[0].mxu0
        %1130 = vmatprep.mubr.f32.mxu0 0.0
        %1131 = vmatmul.mubr.f32.gmra.mrb[0].mxu0 %v1001
        %v1132 = vpop.f32.mrb[0].mxu0
        %v1133 = vadd.f32 0.0, %v1132
        %v1134 = vpop.f32.mrb[0].mxu0
        %1135 = vmatprep.mubr.f32.mxu0 0.0
        %1136 = vmatmul.mubr.f32.gmra.mrb[0].mxu0 %v1002
        %v1137 = vpop.f32.mrb[0].mxu0
        %v1138 = vadd.f32 0.0, %v1137
        %v1139 = vpop.f32.mrb[0].mxu0
        %1140 = vmatprep.mubr.f32.mxu0 0.0
        %1141 = vmatmul.mubr.f32.gmra.mrb[0].mxu0 %v1003
        %v1142 = vpop.f32.mrb[0].mxu0
        %v1143 = vadd.f32 0.0, %v1142
        %v1144 = vpop.f32.mrb[0].mxu0
        %1145 = vmatprep.mubr.f32.mxu0 0.0
        %1146 = vmatmul.mubr.f32.gmra.mrb[0].mxu0 %v1004
        %v1147 = vpop.f32.mrb[0].mxu0
        %v1148 = vadd.f32 0.0, %v1147
        %v1149 = vpop.f32.mrb[0].mxu0
        %1150 = vmatprep.mubr.f32.mxu0 0.0
        %1151 = vmatmul.mubr.f32.gmra.mrb[0].mxu0 %v1005
        %v1152 = vpop.f32.mrb[0].mxu0
        %v1153 = vadd.f32 0.0, %v1152
        %v1154 = vpop.f32.mrb[0].mxu0
        %1155 = vmatprep.mubr.f32.mxu0 0.0
        %1156 = vmatmul.mubr.f32.gmra.mrb[0].mxu0 %v1006
        %v1157 = vpop.f32.mrb[0].mxu0
        %v1158 = vadd.f32 0.0, %v1157
        %v1159 = vpop.f32.mrb[0].mxu0
        %1160 = vmatprep.mubr.f32.mxu0 0.0
        %1161 = vmatmul.mubr.f32.gmra.mrb[0].mxu0 %v1007
        %v1162 = vpop.f32.mrb[0].mxu0
        %v1163 = vadd.f32 0.0, %v1162
        %v1164 = vpop.f32.mrb[0].mxu0
        %1165 = vmatprep.mubr.f32.mxu0 0.0
        %1166 = vmatmul.mubr.f32.gmra.mrb[0].mxu0 %v1008
        %v1167 = vpop.f32.mrb[0].mxu0
        %v1168 = vadd.f32 0.0, %v1167
        %v1169 = vpop.f32.mrb[0].mxu0
        %1170 = vdwg.mxu0
        %v1171 = vadd.f32 %v793, %v1093
        %v1172 = vadd.f32 %v798, %v1098
        %v1173 = vadd.f32 %v803, %v1103
        %v1174 = vadd.f32 %v808, %v1108
        %v1175 = vadd.f32 %v813, %v1113
        %v1176 = vadd.f32 %v818, %v1118
        %v1177 = vadd.f32 %v823, %v1123
        %v1178 = vadd.f32 %v828, %v1128
        %v1179 = vadd.f32 %v833, %v1133
        %v1180 = vadd.f32 %v838, %v1138
        %v1181 = vadd.f32 %v843, %v1143
        %v1182 = vadd.f32 %v848, %v1148
        %v1183 = vadd.f32 %v853, %v1153
        %v1184 = vadd.f32 %v858, %v1158
        %v1185 = vadd.f32 %v863, %v1163
        %v1186 = vadd.f32 %v868, %v1168
        %s1187 = scalar_lea.vmem %s236, 24 [#allocation2]
        %v1188 = vld [vmem:[%s1187] sm:$0xff]
        %v1189 = vlaneseq
        %v1190 = vshrl.u32 %v1189, 7
        %v1191 = vsub.s32 0, %v1190
        %v1192 = vrot.slane %v1188, %v1191
        %1194 = vbcast.lane.b32.xlu0 %v1192, 256
        %v1195 = vpop.permute.xlu0 %1194
        %s1197 = sor.u32 256, 8
        %1198 = vbcast.lane.b32.xlu0 %v1192, %s1197
        %v1199 = vpop.permute.xlu0 %1198
        %v1200 = vlaneseq
        %v1201 = vshrl.u32 %v1200, 7
        %v1202 = vsub.s32 1, %v1201
        %v1203 = vrot.slane %v1188, %v1202
        %1205 = vbcast.lane.b32.xlu0 %v1203, 256
        %v1206 = vpop.permute.xlu0 %1205
        %s1208 = sor.u32 256, 8
        %1209 = vbcast.lane.b32.xlu0 %v1203, %s1208
        %v1210 = vpop.permute.xlu0 %1209
        %v1211 = vlaneseq
        %v1212 = vshrl.u32 %v1211, 7
        %v1213 = vsub.s32 2, %v1212
        %v1214 = vrot.slane %v1188, %v1213
        %1216 = vbcast.lane.b32.xlu0 %v1214, 256
        %v1217 = vpop.permute.xlu0 %1216
        %s1219 = sor.u32 256, 8
        %1220 = vbcast.lane.b32.xlu0 %v1214, %s1219
        %v1221 = vpop.permute.xlu0 %1220
        %v1222 = vlaneseq
        %v1223 = vshrl.u32 %v1222, 7
        %v1224 = vsub.s32 3, %v1223
        %v1225 = vrot.slane %v1188, %v1224
        %1227 = vbcast.lane.b32.xlu0 %v1225, 256
        %v1228 = vpop.permute.xlu0 %1227
        %s1230 = sor.u32 256, 8
        %1231 = vbcast.lane.b32.xlu0 %v1225, %s1230
        %v1232 = vpop.permute.xlu0 %1231
        %v1233 = vlaneseq
        %v1234 = vshrl.u32 %v1233, 7
        %v1235 = vsub.s32 4, %v1234
        %v1236 = vrot.slane %v1188, %v1235
        %1238 = vbcast.lane.b32.xlu0 %v1236, 256
        %v1239 = vpop.permute.xlu0 %1238
        %s1241 = sor.u32 256, 8
        %1242 = vbcast.lane.b32.xlu0 %v1236, %s1241
        %v1243 = vpop.permute.xlu0 %1242
        %v1244 = vlaneseq
        %v1245 = vshrl.u32 %v1244, 7
        %v1246 = vsub.s32 5, %v1245
        %v1247 = vrot.slane %v1188, %v1246
        %1249 = vbcast.lane.b32.xlu0 %v1247, 256
        %v1250 = vpop.permute.xlu0 %1249
        %s1252 = sor.u32 256, 8
        %1253 = vbcast.lane.b32.xlu0 %v1247, %s1252
        %v1254 = vpop.permute.xlu0 %1253
        %v1255 = vlaneseq
        %v1256 = vshrl.u32 %v1255, 7
        %v1257 = vsub.s32 6, %v1256
        %v1258 = vrot.slane %v1188, %v1257
        %1260 = vbcast.lane.b32.xlu0 %v1258, 256
        %v1261 = vpop.permute.xlu0 %1260
        %s1263 = sor.u32 256, 8
        %1264 = vbcast.lane.b32.xlu0 %v1258, %s1263
        %v1265 = vpop.permute.xlu0 %1264
        %v1266 = vlaneseq
        %v1267 = vshrl.u32 %v1266, 7
        %v1268 = vsub.s32 7, %v1267
        %v1269 = vrot.slane %v1188, %v1268
        %1271 = vbcast.lane.b32.xlu0 %v1269, 256
        %v1272 = vpop.permute.xlu0 %1271
        %s1274 = sor.u32 256, 8
        %1275 = vbcast.lane.b32.xlu0 %v1269, %s1274
        %v1276 = vpop.permute.xlu0 %1275
        %vm1277 = vcmp.eq.s32.totalorder %v272, %v1195
        %vm1278 = vcmp.eq.s32.totalorder %v272, %v1199
        %vm1279 = vcmp.eq.s32.totalorder %v272, %v1206
        %vm1280 = vcmp.eq.s32.totalorder %v272, %v1210
        %vm1281 = vcmp.eq.s32.totalorder %v272, %v1217
        %vm1282 = vcmp.eq.s32.totalorder %v272, %v1221
        %vm1283 = vcmp.eq.s32.totalorder %v272, %v1228
        %vm1284 = vcmp.eq.s32.totalorder %v272, %v1232
        %vm1285 = vcmp.eq.s32.totalorder %v272, %v1239
        %vm1286 = vcmp.eq.s32.totalorder %v272, %v1243
        %vm1287 = vcmp.eq.s32.totalorder %v272, %v1250
        %vm1288 = vcmp.eq.s32.totalorder %v272, %v1254
        %vm1289 = vcmp.eq.s32.totalorder %v272, %v1261
        %vm1290 = vcmp.eq.s32.totalorder %v272, %v1265
        %vm1291 = vcmp.eq.s32.totalorder %v272, %v1272
        %vm1292 = vcmp.eq.s32.totalorder %v272, %v1276
        %v1293 = vsel %vm1277, 1, 0
        %v1294 = vsel %vm1278, 1, 0
        %v1295 = vsel %vm1279, 1, 0
        %v1296 = vsel %vm1280, 1, 0
        %v1297 = vsel %vm1281, 1, 0
        %v1298 = vsel %vm1282, 1, 0
        %v1299 = vsel %vm1283, 1, 0
        %v1300 = vsel %vm1284, 1, 0
        %v1301 = vsel %vm1285, 1, 0
        %v1302 = vsel %vm1286, 1, 0
        %v1303 = vsel %vm1287, 1, 0
        %v1304 = vsel %vm1288, 1, 0
        %v1305 = vsel %vm1289, 1, 0
        %v1306 = vsel %vm1290, 1, 0
        %v1307 = vsel %vm1291, 1, 0
        %v1308 = vsel %vm1292, 1, 0
        %v1309 = vcvt.s32.f32 %v1293
        %v1310 = vcvt.s32.f32 %v1294
        %v1311 = vcvt.s32.f32 %v1295
        %v1312 = vcvt.s32.f32 %v1296
        %v1313 = vcvt.s32.f32 %v1297
        %v1314 = vcvt.s32.f32 %v1298
        %v1315 = vcvt.s32.f32 %v1299
        %v1316 = vcvt.s32.f32 %v1300
        %v1317 = vcvt.s32.f32 %v1301
        %v1318 = vcvt.s32.f32 %v1302
        %v1319 = vcvt.s32.f32 %v1303
        %v1320 = vcvt.s32.f32 %v1304
        %v1321 = vcvt.s32.f32 %v1305
        %v1322 = vcvt.s32.f32 %v1306
        %v1323 = vcvt.s32.f32 %v1307
        %v1324 = vcvt.s32.f32 %v1308
        %s1325 = scalar_lea.vmem [#allocation5], 384
        %v1326 = vld [vmem:[%s1325] sm:$0xff]
        %v1327 = vld [vmem:[%s1325 + $0x8] sm:$0xff]
        %v1328 = vld [vmem:[%s1325 + $0x10] sm:$0xff]
        %v1329 = vld [vmem:[%s1325 + $0x18] sm:$0xff]
        %v1330 = vld [vmem:[%s1325 + $0x20] sm:$0xff]
        %v1331 = vld [vmem:[%s1325 + $0x28] sm:$0xff]
        %v1332 = vld [vmem:[%s1325 + $0x30] sm:$0xff]
        %v1333 = vld [vmem:[%s1325 + $0x38] sm:$0xff]
        %v1334 = vld [vmem:[%s1325 + $0x40] sm:$0xff]
        %v1335 = vld [vmem:[%s1325 + $0x48] sm:$0xff]
        %v1336 = vld [vmem:[%s1325 + $0x50] sm:$0xff]
        %v1337 = vld [vmem:[%s1325 + $0x58] sm:$0xff]
        %v1338 = vld [vmem:[%s1325 + $0x60] sm:$0xff]
        %v1339 = vld [vmem:[%s1325 + $0x68] sm:$0xff]
        %v1340 = vld [vmem:[%s1325 + $0x70] sm:$0xff]
        %v1341 = vld [vmem:[%s1325 + $0x78] sm:$0xff]
        %1342 = vmatprep.subr.mxu0 0.0
        %1343 = vmatpush1.msra.mxu0 %v1326
        %1344 = vmatprep.subr.mxu0 0.0
        %1345 = vmatpush1.msra.mxu0 %v1327
        %1346 = vmatprep.subr.mxu0 0.0
        %1347 = vmatpush1.msra.mxu0 %v1328
        %1348 = vmatprep.subr.mxu0 0.0
        %1349 = vmatpush1.msra.mxu0 %v1329
        %1350 = vmatprep.subr.mxu0 0.0
        %1351 = vmatpush1.msra.mxu0 %v1330
        %1352 = vmatprep.subr.mxu0 0.0
        %1353 = vmatpush1.msra.mxu0 %v1331
        %1354 = vmatprep.subr.mxu0 0.0
        %1355 = vmatpush1.msra.mxu0 %v1332
        %1356 = vmatprep.subr.mxu0 0.0
        %1357 = vmatpush1.msra.mxu0 %v1333
        %1358 = vmatprep.subr.mxu0 0.0
        %1359 = vmatpush1.msra.mxu0 %v1334
        %1360 = vmatprep.subr.mxu0 0.0
        %1361 = vmatpush1.msra.mxu0 %v1335
        %1362 = vmatprep.subr.mxu0 0.0
        %1363 = vmatpush1.msra.mxu0 %v1336
        %1364 = vmatprep.subr.mxu0 0.0
        %1365 = vmatpush1.msra.mxu0 %v1337
        %1366 = vmatprep.subr.mxu0 0.0
        %1367 = vmatpush1.msra.mxu0 %v1338
        %1368 = vmatprep.subr.mxu0 0.0
        %1369 = vmatpush1.msra.mxu0 %v1339
        %1370 = vmatprep.subr.mxu0 0.0
        %1371 = vmatpush1.msra.mxu0 %v1340
        %1372 = vmatprep.subr.mxu0 0.0
        %1373 = vmatpush1.msra.mxu0 %v1341
        %1374 = vmatprep.subr.mxu0 0.0
        %1375 = vmatpush1.msra.mxu0 0.0
        %1376 = vmatprep.subr.mxu0 0.0
        %1377 = vmatpush1.msra.mxu0 0.0
        %1378 = vmatprep.subr.mxu0 0.0
        %1379 = vmatpush1.msra.mxu0 0.0
        %1380 = vmatprep.subr.mxu0 0.0
        %1381 = vmatpush1.msra.mxu0 0.0
        %1382 = vmatprep.subr.mxu0 0.0
        %1383 = vmatpush1.msra.mxu0 0.0
        %1384 = vmatprep.subr.mxu0 0.0
        %1385 = vmatpush1.msra.mxu0 0.0
        %1386 = vmatprep.subr.mxu0 0.0
        %1387 = vmatpush1.msra.mxu0 0.0
        %1388 = vmatprep.subr.mxu0 0.0
        %1389 = vmatpush1.msra.mxu0 0.0
        %1390 = vmatprep.subr.mxu0 0.0
        %1391 = vmatpush1.msra.mxu0 0.0
        %1392 = vmatprep.subr.mxu0 0.0
        %1393 = vmatpush1.msra.mxu0 0.0
        %1394 = vmatprep.subr.mxu0 0.0
        %1395 = vmatpush1.msra.mxu0 0.0
        %1396 = vmatprep.subr.mxu0 0.0
        %1397 = vmatpush1.msra.mxu0 0.0
        %1398 = vmatprep.subr.mxu0 0.0
        %1399 = vmatpush1.msra.mxu0 0.0
        %1400 = vmatprep.subr.mxu0 0.0
        %1401 = vmatpush1.msra.mxu0 0.0
        %1402 = vmatprep.subr.mxu0 0.0
        %1403 = vmatpush1.msra.mxu0 0.0
        %1404 = vmatprep.subr.mxu0 0.0
        %1405 = vmatpush1.msra.mxu0 0.0
        %1406 = vmatprep.mubr.f32.mxu0 0.0
        %1407 = vmatmul.mubr.f32.gmra.mrb[0].mxu0 %v1309
        %v1408 = vpop.f32.mrb[0].mxu0
        %v1409 = vadd.f32 0.0, %v1408
        %v1410 = vpop.f32.mrb[0].mxu0
        %1411 = vmatprep.mubr.f32.mxu0 0.0
        %1412 = vmatmul.mubr.f32.gmra.mrb[0].mxu0 %v1310
        %v1413 = vpop.f32.mrb[0].mxu0
        %v1414 = vadd.f32 0.0, %v1413
        %v1415 = vpop.f32.mrb[0].mxu0
        %1416 = vmatprep.mubr.f32.mxu0 0.0
        %1417 = vmatmul.mubr.f32.gmra.mrb[0].mxu0 %v1311
        %v1418 = vpop.f32.mrb[0].mxu0
        %v1419 = vadd.f32 0.0, %v1418
        %v1420 = vpop.f32.mrb[0].mxu0
        %1421 = vmatprep.mubr.f32.mxu0 0.0
        %1422 = vmatmul.mubr.f32.gmra.mrb[0].mxu0 %v1312
        %v1423 = vpop.f32.mrb[0].mxu0
        %v1424 = vadd.f32 0.0, %v1423
        %v1425 = vpop.f32.mrb[0].mxu0
        %1426 = vmatprep.mubr.f32.mxu0 0.0
        %1427 = vmatmul.mubr.f32.gmra.mrb[0].mxu0 %v1313
        %v1428 = vpop.f32.mrb[0].mxu0
        %v1429 = vadd.f32 0.0, %v1428
        %v1430 = vpop.f32.mrb[0].mxu0
        %1431 = vmatprep.mubr.f32.mxu0 0.0
        %1432 = vmatmul.mubr.f32.gmra.mrb[0].mxu0 %v1314
        %v1433 = vpop.f32.mrb[0].mxu0
        %v1434 = vadd.f32 0.0, %v1433
        %v1435 = vpop.f32.mrb[0].mxu0
        %1436 = vmatprep.mubr.f32.mxu0 0.0
        %1437 = vmatmul.mubr.f32.gmra.mrb[0].mxu0 %v1315
        %v1438 = vpop.f32.mrb[0].mxu0
        %v1439 = vadd.f32 0.0, %v1438
        %v1440 = vpop.f32.mrb[0].mxu0
        %1441 = vmatprep.mubr.f32.mxu0 0.0
        %1442 = vmatmul.mubr.f32.gmra.mrb[0].mxu0 %v1316
        %v1443 = vpop.f32.mrb[0].mxu0
        %v1444 = vadd.f32 0.0, %v1443
        %v1445 = vpop.f32.mrb[0].mxu0
        %1446 = vmatprep.mubr.f32.mxu0 0.0
        %1447 = vmatmul.mubr.f32.gmra.mrb[0].mxu0 %v1317
        %v1448 = vpop.f32.mrb[0].mxu0
        %v1449 = vadd.f32 0.0, %v1448
        %v1450 = vpop.f32.mrb[0].mxu0
        %1451 = vmatprep.mubr.f32.mxu0 0.0
        %1452 = vmatmul.mubr.f32.gmra.mrb[0].mxu0 %v1318
        %v1453 = vpop.f32.mrb[0].mxu0
        %v1454 = vadd.f32 0.0, %v1453
        %v1455 = vpop.f32.mrb[0].mxu0
        %1456 = vmatprep.mubr.f32.mxu0 0.0
        %1457 = vmatmul.mubr.f32.gmra.mrb[0].mxu0 %v1319
        %v1458 = vpop.f32.mrb[0].mxu0
        %v1459 = vadd.f32 0.0, %v1458
        %v1460 = vpop.f32.mrb[0].mxu0
        %1461 = vmatprep.mubr.f32.mxu0 0.0
        %1462 = vmatmul.mubr.f32.gmra.mrb[0].mxu0 %v1320
        %v1463 = vpop.f32.mrb[0].mxu0
        %v1464 = vadd.f32 0.0, %v1463
        %v1465 = vpop.f32.mrb[0].mxu0
        %1466 = vmatprep.mubr.f32.mxu0 0.0
        %1467 = vmatmul.mubr.f32.gmra.mrb[0].mxu0 %v1321
        %v1468 = vpop.f32.mrb[0].mxu0
        %v1469 = vadd.f32 0.0, %v1468
        %v1470 = vpop.f32.mrb[0].mxu0
        %1471 = vmatprep.mubr.f32.mxu0 0.0
        %1472 = vmatmul.mubr.f32.gmra.mrb[0].mxu0 %v1322
        %v1473 = vpop.f32.mrb[0].mxu0
        %v1474 = vadd.f32 0.0, %v1473
        %v1475 = vpop.f32.mrb[0].mxu0
        %1476 = vmatprep.mubr.f32.mxu0 0.0
        %1477 = vmatmul.mubr.f32.gmra.mrb[0].mxu0 %v1323
        %v1478 = vpop.f32.mrb[0].mxu0
        %v1479 = vadd.f32 0.0, %v1478
        %v1480 = vpop.f32.mrb[0].mxu0
        %1481 = vmatprep.mubr.f32.mxu0 0.0
        %1482 = vmatmul.mubr.f32.gmra.mrb[0].mxu0 %v1324
        %v1483 = vpop.f32.mrb[0].mxu0
        %v1484 = vadd.f32 0.0, %v1483
        %v1485 = vpop.f32.mrb[0].mxu0
        %1486 = vdwg.mxu0
        %v1487 = vadd.f32 %v1171, %v1409
        %v1488 = vadd.f32 %v1172, %v1414
        %v1489 = vadd.f32 %v1173, %v1419
        %v1490 = vadd.f32 %v1174, %v1424
        %v1491 = vadd.f32 %v1175, %v1429
        %v1492 = vadd.f32 %v1176, %v1434
        %v1493 = vadd.f32 %v1177, %v1439
        %v1494 = vadd.f32 %v1178, %v1444
        %v1495 = vadd.f32 %v1179, %v1449
        %v1496 = vadd.f32 %v1180, %v1454
        %v1497 = vadd.f32 %v1181, %v1459
        %v1498 = vadd.f32 %v1182, %v1464
        %v1499 = vadd.f32 %v1183, %v1469
        %v1500 = vadd.f32 %v1184, %v1474
        %v1501 = vadd.f32 %v1185, %v1479
        %v1502 = vadd.f32 %v1186, %v1484
        %s1503 = scalar_lea.vmem %s236, 32 [#allocation2]
        %v1504 = vld [vmem:[%s1503] sm:$0xff]
        %v1505 = vlaneseq
        %v1506 = vshrl.u32 %v1505, 7
        %v1507 = vsub.s32 0, %v1506
        %v1508 = vrot.slane %v1504, %v1507
        %1510 = vbcast.lane.b32.xlu0 %v1508, 256
        %v1511 = vpop.permute.xlu0 %1510
        %s1513 = sor.u32 256, 8
        %1514 = vbcast.lane.b32.xlu0 %v1508, %s1513
        %v1515 = vpop.permute.xlu0 %1514
        %v1516 = vlaneseq
        %v1517 = vshrl.u32 %v1516, 7
        %v1518 = vsub.s32 1, %v1517
        %v1519 = vrot.slane %v1504, %v1518
        %1521 = vbcast.lane.b32.xlu0 %v1519, 256
        %v1522 = vpop.permute.xlu0 %1521
        %s1524 = sor.u32 256, 8
        %1525 = vbcast.lane.b32.xlu0 %v1519, %s1524
        %v1526 = vpop.permute.xlu0 %1525
        %v1527 = vlaneseq
        %v1528 = vshrl.u32 %v1527, 7
        %v1529 = vsub.s32 2, %v1528
        %v1530 = vrot.slane %v1504, %v1529
        %1532 = vbcast.lane.b32.xlu0 %v1530, 256
        %v1533 = vpop.permute.xlu0 %1532
        %s1535 = sor.u32 256, 8
        %1536 = vbcast.lane.b32.xlu0 %v1530, %s1535
        %v1537 = vpop.permute.xlu0 %1536
        %v1538 = vlaneseq
        %v1539 = vshrl.u32 %v1538, 7
        %v1540 = vsub.s32 3, %v1539
        %v1541 = vrot.slane %v1504, %v1540
        %1543 = vbcast.lane.b32.xlu0 %v1541, 256
        %v1544 = vpop.permute.xlu0 %1543
        %s1546 = sor.u32 256, 8
        %1547 = vbcast.lane.b32.xlu0 %v1541, %s1546
        %v1548 = vpop.permute.xlu0 %1547
        %v1549 = vlaneseq
        %v1550 = vshrl.u32 %v1549, 7
        %v1551 = vsub.s32 4, %v1550
        %v1552 = vrot.slane %v1504, %v1551
        %1554 = vbcast.lane.b32.xlu0 %v1552, 256
        %v1555 = vpop.permute.xlu0 %1554
        %s1557 = sor.u32 256, 8
        %1558 = vbcast.lane.b32.xlu0 %v1552, %s1557
        %v1559 = vpop.permute.xlu0 %1558
        %v1560 = vlaneseq
        %v1561 = vshrl.u32 %v1560, 7
        %v1562 = vsub.s32 5, %v1561
        %v1563 = vrot.slane %v1504, %v1562
        %1565 = vbcast.lane.b32.xlu0 %v1563, 256
        %v1566 = vpop.permute.xlu0 %1565
        %s1568 = sor.u32 256, 8
        %1569 = vbcast.lane.b32.xlu0 %v1563, %s1568
        %v1570 = vpop.permute.xlu0 %1569
        %v1571 = vlaneseq
        %v1572 = vshrl.u32 %v1571, 7
        %v1573 = vsub.s32 6, %v1572
        %v1574 = vrot.slane %v1504, %v1573
        %1576 = vbcast.lane.b32.xlu0 %v1574, 256
        %v1577 = vpop.permute.xlu0 %1576
        %s1579 = sor.u32 256, 8
        %1580 = vbcast.lane.b32.xlu0 %v1574, %s1579
        %v1581 = vpop.permute.xlu0 %1580
        %v1582 = vlaneseq
        %v1583 = vshrl.u32 %v1582, 7
        %v1584 = vsub.s32 7, %v1583
        %v1585 = vrot.slane %v1504, %v1584
        %1587 = vbcast.lane.b32.xlu0 %v1585, 256
        %v1588 = vpop.permute.xlu0 %1587
        %s1590 = sor.u32 256, 8
        %1591 = vbcast.lane.b32.xlu0 %v1585, %s1590
        %v1592 = vpop.permute.xlu0 %1591
        %vm1593 = vcmp.eq.s32.totalorder %v272, %v1511
        %vm1594 = vcmp.eq.s32.totalorder %v272, %v1515
        %vm1595 = vcmp.eq.s32.totalorder %v272, %v1522
        %vm1596 = vcmp.eq.s32.totalorder %v272, %v1526
        %vm1597 = vcmp.eq.s32.totalorder %v272, %v1533
        %vm1598 = vcmp.eq.s32.totalorder %v272, %v1537
        %vm1599 = vcmp.eq.s32.totalorder %v272, %v1544
        %vm1600 = vcmp.eq.s32.totalorder %v272, %v1548
        %vm1601 = vcmp.eq.s32.totalorder %v272, %v1555
        %vm1602 = vcmp.eq.s32.totalorder %v272, %v1559
        %vm1603 = vcmp.eq.s32.totalorder %v272, %v1566
        %vm1604 = vcmp.eq.s32.totalorder %v272, %v1570
        %vm1605 = vcmp.eq.s32.totalorder %v272, %v1577
        %vm1606 = vcmp.eq.s32.totalorder %v272, %v1581
        %vm1607 = vcmp.eq.s32.totalorder %v272, %v1588
        %vm1608 = vcmp.eq.s32.totalorder %v272, %v1592
        %v1609 = vsel %vm1593, 1, 0
        %v1610 = vsel %vm1594, 1, 0
        %v1611 = vsel %vm1595, 1, 0
        %v1612 = vsel %vm1596, 1, 0
        %v1613 = vsel %vm1597, 1, 0
        %v1614 = vsel %vm1598, 1, 0
        %v1615 = vsel %vm1599, 1, 0
        %v1616 = vsel %vm1600, 1, 0
        %v1617 = vsel %vm1601, 1, 0
        %v1618 = vsel %vm1602, 1, 0
        %v1619 = vsel %vm1603, 1, 0
        %v1620 = vsel %vm1604, 1, 0
        %v1621 = vsel %vm1605, 1, 0
        %v1622 = vsel %vm1606, 1, 0
        %v1623 = vsel %vm1607, 1, 0
        %v1624 = vsel %vm1608, 1, 0
        %v1625 = vcvt.s32.f32 %v1609
        %v1626 = vcvt.s32.f32 %v1610
        %v1627 = vcvt.s32.f32 %v1611
        %v1628 = vcvt.s32.f32 %v1612
        %v1629 = vcvt.s32.f32 %v1613
        %v1630 = vcvt.s32.f32 %v1614
        %v1631 = vcvt.s32.f32 %v1615
        %v1632 = vcvt.s32.f32 %v1616
        %v1633 = vcvt.s32.f32 %v1617
        %v1634 = vcvt.s32.f32 %v1618
        %v1635 = vcvt.s32.f32 %v1619
        %v1636 = vcvt.s32.f32 %v1620
        %v1637 = vcvt.s32.f32 %v1621
        %v1638 = vcvt.s32.f32 %v1622
        %v1639 = vcvt.s32.f32 %v1623
        %v1640 = vcvt.s32.f32 %v1624
        %s1641 = scalar_lea.vmem [#allocation5], 512
        %v1642 = vld [vmem:[%s1641] sm:$0xff]
        %v1643 = vld [vmem:[%s1641 + $0x8] sm:$0xff]
        %v1644 = vld [vmem:[%s1641 + $0x10] sm:$0xff]
        %v1645 = vld [vmem:[%s1641 + $0x18] sm:$0xff]
        %v1646 = vld [vmem:[%s1641 + $0x20] sm:$0xff]
        %v1647 = vld [vmem:[%s1641 + $0x28] sm:$0xff]
        %v1648 = vld [vmem:[%s1641 + $0x30] sm:$0xff]
        %v1649 = vld [vmem:[%s1641 + $0x38] sm:$0xff]
        %v1650 = vld [vmem:[%s1641 + $0x40] sm:$0xff]
        %v1651 = vld [vmem:[%s1641 + $0x48] sm:$0xff]
        %v1652 = vld [vmem:[%s1641 + $0x50] sm:$0xff]
        %v1653 = vld [vmem:[%s1641 + $0x58] sm:$0xff]
        %v1654 = vld [vmem:[%s1641 + $0x60] sm:$0xff]
        %v1655 = vld [vmem:[%s1641 + $0x68] sm:$0xff]
        %v1656 = vld [vmem:[%s1641 + $0x70] sm:$0xff]
        %v1657 = vld [vmem:[%s1641 + $0x78] sm:$0xff]
        %1658 = vmatprep.subr.mxu0 0.0
        %1659 = vmatpush1.msra.mxu0 %v1642
        %1660 = vmatprep.subr.mxu0 0.0
        %1661 = vmatpush1.msra.mxu0 %v1643
        %1662 = vmatprep.subr.mxu0 0.0
        %1663 = vmatpush1.msra.mxu0 %v1644
        %1664 = vmatprep.subr.mxu0 0.0
        %1665 = vmatpush1.msra.mxu0 %v1645
        %1666 = vmatprep.subr.mxu0 0.0
        %1667 = vmatpush1.msra.mxu0 %v1646
        %1668 = vmatprep.subr.mxu0 0.0
        %1669 = vmatpush1.msra.mxu0 %v1647
        %1670 = vmatprep.subr.mxu0 0.0
        %1671 = vmatpush1.msra.mxu0 %v1648
        %1672 = vmatprep.subr.mxu0 0.0
        %1673 = vmatpush1.msra.mxu0 %v1649
        %1674 = vmatprep.subr.mxu0 0.0
        %1675 = vmatpush1.msra.mxu0 %v1650
        %1676 = vmatprep.subr.mxu0 0.0
        %1677 = vmatpush1.msra.mxu0 %v1651
        %1678 = vmatprep.subr.mxu0 0.0
        %1679 = vmatpush1.msra.mxu0 %v1652
        %1680 = vmatprep.subr.mxu0 0.0
        %1681 = vmatpush1.msra.mxu0 %v1653
        %1682 = vmatprep.subr.mxu0 0.0
        %1683 = vmatpush1.msra.mxu0 %v1654
        %1684 = vmatprep.subr.mxu0 0.0
        %1685 = vmatpush1.msra.mxu0 %v1655
        %1686 = vmatprep.subr.mxu0 0.0
        %1687 = vmatpush1.msra.mxu0 %v1656
        %1688 = vmatprep.subr.mxu0 0.0
        %1689 = vmatpush1.msra.mxu0 %v1657
        %1690 = vmatprep.subr.mxu0 0.0
        %1691 = vmatpush1.msra.mxu0 0.0
        %1692 = vmatprep.subr.mxu0 0.0
        %1693 = vmatpush1.msra.mxu0 0.0
        %1694 = vmatprep.subr.mxu0 0.0
        %1695 = vmatpush1.msra.mxu0 0.0
        %1696 = vmatprep.subr.mxu0 0.0
        %1697 = vmatpush1.msra.mxu0 0.0
        %1698 = vmatprep.subr.mxu0 0.0
        %1699 = vmatpush1.msra.mxu0 0.0
        %1700 = vmatprep.subr.mxu0 0.0
        %1701 = vmatpush1.msra.mxu0 0.0
        %1702 = vmatprep.subr.mxu0 0.0
        %1703 = vmatpush1.msra.mxu0 0.0
        %1704 = vmatprep.subr.mxu0 0.0
        %1705 = vmatpush1.msra.mxu0 0.0
        %1706 = vmatprep.subr.mxu0 0.0
        %1707 = vmatpush1.msra.mxu0 0.0
        %1708 = vmatprep.subr.mxu0 0.0
        %1709 = vmatpush1.msra.mxu0 0.0
        %1710 = vmatprep.subr.mxu0 0.0
        %1711 = vmatpush1.msra.mxu0 0.0
        %1712 = vmatprep.subr.mxu0 0.0
        %1713 = vmatpush1.msra.mxu0 0.0
        %1714 = vmatprep.subr.mxu0 0.0
        %1715 = vmatpush1.msra.mxu0 0.0
        %1716 = vmatprep.subr.mxu0 0.0
        %1717 = vmatpush1.msra.mxu0 0.0
        %1718 = vmatprep.subr.mxu0 0.0
        %1719 = vmatpush1.msra.mxu0 0.0
        %1720 = vmatprep.subr.mxu0 0.0
        %1721 = vmatpush1.msra.mxu0 0.0
        %1722 = vmatprep.mubr.f32.mxu0 0.0
        %1723 = vmatmul.mubr.f32.gmra.mrb[0].mxu0 %v1625
        %v1724 = vpop.f32.mrb[0].mxu0
        %v1725 = vadd.f32 0.0, %v1724
        %v1726 = vpop.f32.mrb[0].mxu0
        %1727 = vmatprep.mubr.f32.mxu0 0.0
        %1728 = vmatmul.mubr.f32.gmra.mrb[0].mxu0 %v1626
        %v1729 = vpop.f32.mrb[0].mxu0
        %v1730 = vadd.f32 0.0, %v1729
        %v1731 = vpop.f32.mrb[0].mxu0
        %1732 = vmatprep.mubr.f32.mxu0 0.0
        %1733 = vmatmul.mubr.f32.gmra.mrb[0].mxu0 %v1627
        %v1734 = vpop.f32.mrb[0].mxu0
        %v1735 = vadd.f32 0.0, %v1734
        %v1736 = vpop.f32.mrb[0].mxu0
        %1737 = vmatprep.mubr.f32.mxu0 0.0
        %1738 = vmatmul.mubr.f32.gmra.mrb[0].mxu0 %v1628
        %v1739 = vpop.f32.mrb[0].mxu0
        %v1740 = vadd.f32 0.0, %v1739
        %v1741 = vpop.f32.mrb[0].mxu0
        %1742 = vmatprep.mubr.f32.mxu0 0.0
        %1743 = vmatmul.mubr.f32.gmra.mrb[0].mxu0 %v1629
        %v1744 = vpop.f32.mrb[0].mxu0
        %v1745 = vadd.f32 0.0, %v1744
        %v1746 = vpop.f32.mrb[0].mxu0
        %1747 = vmatprep.mubr.f32.mxu0 0.0
        %1748 = vmatmul.mubr.f32.gmra.mrb[0].mxu0 %v1630
        %v1749 = vpop.f32.mrb[0].mxu0
        %v1750 = vadd.f32 0.0, %v1749
        %v1751 = vpop.f32.mrb[0].mxu0
        %1752 = vmatprep.mubr.f32.mxu0 0.0
        %1753 = vmatmul.mubr.f32.gmra.mrb[0].mxu0 %v1631
        %v1754 = vpop.f32.mrb[0].mxu0
        %v1755 = vadd.f32 0.0, %v1754
        %v1756 = vpop.f32.mrb[0].mxu0
        %1757 = vmatprep.mubr.f32.mxu0 0.0
        %1758 = vmatmul.mubr.f32.gmra.mrb[0].mxu0 %v1632
        %v1759 = vpop.f32.mrb[0].mxu0
        %v1760 = vadd.f32 0.0, %v1759
        %v1761 = vpop.f32.mrb[0].mxu0
        %1762 = vmatprep.mubr.f32.mxu0 0.0
        %1763 = vmatmul.mubr.f32.gmra.mrb[0].mxu0 %v1633
        %v1764 = vpop.f32.mrb[0].mxu0
        %v1765 = vadd.f32 0.0, %v1764
        %v1766 = vpop.f32.mrb[0].mxu0
        %1767 = vmatprep.mubr.f32.mxu0 0.0
        %1768 = vmatmul.mubr.f32.gmra.mrb[0].mxu0 %v1634
        %v1769 = vpop.f32.mrb[0].mxu0
        %v1770 = vadd.f32 0.0, %v1769
        %v1771 = vpop.f32.mrb[0].mxu0
        %1772 = vmatprep.mubr.f32.mxu0 0.0
        %1773 = vmatmul.mubr.f32.gmra.mrb[0].mxu0 %v1635
        %v1774 = vpop.f32.mrb[0].mxu0
        %v1775 = vadd.f32 0.0, %v1774
        %v1776 = vpop.f32.mrb[0].mxu0
        %1777 = vmatprep.mubr.f32.mxu0 0.0
        %1778 = vmatmul.mubr.f32.gmra.mrb[0].mxu0 %v1636
        %v1779 = vpop.f32.mrb[0].mxu0
        %v1780 = vadd.f32 0.0, %v1779
        %v1781 = vpop.f32.mrb[0].mxu0
        %1782 = vmatprep.mubr.f32.mxu0 0.0
        %1783 = vmatmul.mubr.f32.gmra.mrb[0].mxu0 %v1637
        %v1784 = vpop.f32.mrb[0].mxu0
        %v1785 = vadd.f32 0.0, %v1784
        %v1786 = vpop.f32.mrb[0].mxu0
        %1787 = vmatprep.mubr.f32.mxu0 0.0
        %1788 = vmatmul.mubr.f32.gmra.mrb[0].mxu0 %v1638
        %v1789 = vpop.f32.mrb[0].mxu0
        %v1790 = vadd.f32 0.0, %v1789
        %v1791 = vpop.f32.mrb[0].mxu0
        %1792 = vmatprep.mubr.f32.mxu0 0.0
        %1793 = vmatmul.mubr.f32.gmra.mrb[0].mxu0 %v1639
        %v1794 = vpop.f32.mrb[0].mxu0
        %v1795 = vadd.f32 0.0, %v1794
        %v1796 = vpop.f32.mrb[0].mxu0
        %1797 = vmatprep.mubr.f32.mxu0 0.0
        %1798 = vmatmul.mubr.f32.gmra.mrb[0].mxu0 %v1640
        %v1799 = vpop.f32.mrb[0].mxu0
        %v1800 = vadd.f32 0.0, %v1799
        %v1801 = vpop.f32.mrb[0].mxu0
        %1802 = vdwg.mxu0
        %v1803 = vadd.f32 %v1487, %v1725
        %v1804 = vadd.f32 %v1488, %v1730
        %v1805 = vadd.f32 %v1489, %v1735
        %v1806 = vadd.f32 %v1490, %v1740
        %v1807 = vadd.f32 %v1491, %v1745
        %v1808 = vadd.f32 %v1492, %v1750
        %v1809 = vadd.f32 %v1493, %v1755
        %v1810 = vadd.f32 %v1494, %v1760
        %v1811 = vadd.f32 %v1495, %v1765
        %v1812 = vadd.f32 %v1496, %v1770
        %v1813 = vadd.f32 %v1497, %v1775
        %v1814 = vadd.f32 %v1498, %v1780
        %v1815 = vadd.f32 %v1499, %v1785
        %v1816 = vadd.f32 %v1500, %v1790
        %v1817 = vadd.f32 %v1501, %v1795
        %v1818 = vadd.f32 %v1502, %v1800
        %v1819 = vld [vmem:[%s2] sm:$0x1]
        %v1821 = vlaneseq
        %v1822 = vshrl.u32 %v1821, 7
        %v1823 = vsub.s32 0, %v1822
        %v1824 = vrot.slane %v1819, %v1823
        %v1826 = vadd.f32 %v1803, %v1824
        %v1827 = vadd.f32 %v1804, %v1824
        %v1828 = vadd.f32 %v1805, %v1824
        %v1829 = vadd.f32 %v1806, %v1824
        %v1830 = vadd.f32 %v1807, %v1824
        %v1831 = vadd.f32 %v1808, %v1824
        %v1832 = vadd.f32 %v1809, %v1824
        %v1833 = vadd.f32 %v1810, %v1824
        %v1834 = vadd.f32 %v1811, %v1824
        %v1835 = vadd.f32 %v1812, %v1824
        %v1836 = vadd.f32 %v1813, %v1824
        %v1837 = vadd.f32 %v1814, %v1824
        %v1838 = vadd.f32 %v1815, %v1824
        %v1839 = vadd.f32 %v1816, %v1824
        %v1840 = vadd.f32 %v1817, %v1824
        %v1841 = vadd.f32 %v1818, %v1824
        %v1842 = vmax.f32 %v1826, 0.0
        %v1843 = vmax.f32 %v1827, 0.0
        %v1844 = vmax.f32 %v1828, 0.0
        %v1845 = vmax.f32 %v1829, 0.0
        %v1846 = vmax.f32 %v1830, 0.0
        %v1847 = vmax.f32 %v1831, 0.0
        %v1848 = vmax.f32 %v1832, 0.0
        %v1849 = vmax.f32 %v1833, 0.0
        %v1850 = vmax.f32 %v1834, 0.0
        %v1851 = vmax.f32 %v1835, 0.0
        %v1852 = vmax.f32 %v1836, 0.0
        %v1853 = vmax.f32 %v1837, 0.0
        %v1854 = vmax.f32 %v1838, 0.0
        %v1855 = vmax.f32 %v1839, 0.0
        %v1856 = vmax.f32 %v1840, 0.0
        %v1857 = vmax.f32 %v1841, 0.0
        %v1858 = vmax.f32 %v1842, %v1843
        %v1859 = vrot.slane %v1858, 4
        %v1860 = vmax.f32 %v1858, %v1859
        %v1861 = vrot.slane %v1860, 2
        %v1862 = vmax.f32 %v1860, %v1861
        %v1863 = vrot.slane %v1862, 1
        %v1864 = vmax.f32 %v1862, %v1863
        %v1865 = vmax.f32 %v1844, %v1845
        %v1866 = vrot.slane %v1865, 4
        %v1867 = vmax.f32 %v1865, %v1866
        %v1868 = vrot.slane %v1867, 2
        %v1869 = vmax.f32 %v1867, %v1868
        %v1870 = vrot.slane %v1869, 1
        %v1871 = vmax.f32 %v1869, %v1870
        %v1872 = vmax.f32 %v1846, %v1847
        %v1873 = vrot.slane %v1872, 4
        %v1874 = vmax.f32 %v1872, %v1873
        %v1875 = vrot.slane %v1874, 2
        %v1876 = vmax.f32 %v1874, %v1875
        %v1877 = vrot.slane %v1876, 1
        %v1878 = vmax.f32 %v1876, %v1877
        %v1879 = vmax.f32 %v1848, %v1849
        %v1880 = vrot.slane %v1879, 4
        %v1881 = vmax.f32 %v1879, %v1880
        %v1882 = vrot.slane %v1881, 2
        %v1883 = vmax.f32 %v1881, %v1882
        %v1884 = vrot.slane %v1883, 1
        %v1885 = vmax.f32 %v1883, %v1884
        %v1886 = vmax.f32 %v1850, %v1851
        %v1887 = vrot.slane %v1886, 4
        %v1888 = vmax.f32 %v1886, %v1887
        %v1889 = vrot.slane %v1888, 2
        %v1890 = vmax.f32 %v1888, %v1889
        %v1891 = vrot.slane %v1890, 1
        %v1892 = vmax.f32 %v1890, %v1891
        %v1893 = vmax.f32 %v1852, %v1853
        %v1894 = vrot.slane %v1893, 4
        %v1895 = vmax.f32 %v1893, %v1894
        %v1896 = vrot.slane %v1895, 2
        %v1897 = vmax.f32 %v1895, %v1896
        %v1898 = vrot.slane %v1897, 1
        %v1899 = vmax.f32 %v1897, %v1898
        %v1900 = vmax.f32 %v1854, %v1855
        %v1901 = vrot.slane %v1900, 4
        %v1902 = vmax.f32 %v1900, %v1901
        %v1903 = vrot.slane %v1902, 2
        %v1904 = vmax.f32 %v1902, %v1903
        %v1905 = vrot.slane %v1904, 1
        %v1906 = vmax.f32 %v1904, %v1905
        %v1907 = vmax.f32 %v1856, %v1857
        %v1908 = vrot.slane %v1907, 4
        %v1909 = vmax.f32 %v1907, %v1908
        %v1910 = vrot.slane %v1909, 2
        %v1911 = vmax.f32 %v1909, %v1910
        %v1912 = vrot.slane %v1911, 1
        %v1913 = vmax.f32 %v1911, %v1912
        %v1914 = vld [vmem:[#allocation7] sm:$0xff]
        %v1915 = vld [vmem:[#allocation7 + $0x8] sm:$0xff]
        %v1916 = vld [vmem:[#allocation7 + $0x10] sm:$0xff]
        %v1917 = vld [vmem:[#allocation7 + $0x18] sm:$0xff]
        %v1918 = vld [vmem:[#allocation7 + $0x20] sm:$0xff]
        %v1919 = vld [vmem:[#allocation7 + $0x28] sm:$0xff]
        %v1920 = vld [vmem:[#allocation7 + $0x30] sm:$0xff]
        %v1921 = vld [vmem:[#allocation7 + $0x38] sm:$0xff]
        %v1922 = vld [vmem:[#allocation7 + $0x40] sm:$0xff]
        %v1923 = vld [vmem:[#allocation7 + $0x48] sm:$0xff]
        %v1924 = vld [vmem:[#allocation7 + $0x50] sm:$0xff]
        %v1925 = vld [vmem:[#allocation7 + $0x58] sm:$0xff]
        %v1926 = vld [vmem:[#allocation7 + $0x60] sm:$0xff]
        %v1927 = vld [vmem:[#allocation7 + $0x68] sm:$0xff]
        %v1928 = vld [vmem:[#allocation7 + $0x70] sm:$0xff]
        %v1929 = vld [vmem:[#allocation7 + $0x78] sm:$0xff]
        %v1930 = vld [vmem:[#allocation7 + $0x80] sm:$0xff]
        %v1931 = vld [vmem:[#allocation7 + $0x88] sm:$0xff]
        %v1932 = vld [vmem:[#allocation7 + $0x90] sm:$0xff]
        %v1933 = vld [vmem:[#allocation7 + $0x98] sm:$0xff]
        %v1934 = vld [vmem:[#allocation7 + $0xa0] sm:$0xff]
        %v1935 = vld [vmem:[#allocation7 + $0xa8] sm:$0xff]
        %v1936 = vld [vmem:[#allocation7 + $0xb0] sm:$0xff]
        %v1937 = vld [vmem:[#allocation7 + $0xb8] sm:$0xff]
        %v1938 = vld [vmem:[#allocation7 + $0xc0] sm:$0xff]
        %v1939 = vld [vmem:[#allocation7 + $0xc8] sm:$0xff]
        %v1940 = vld [vmem:[#allocation7 + $0xd0] sm:$0xff]
        %v1941 = vld [vmem:[#allocation7 + $0xd8] sm:$0xff]
        %v1942 = vld [vmem:[#allocation7 + $0xe0] sm:$0xff]
        %v1943 = vld [vmem:[#allocation7 + $0xe8] sm:$0xff]
        %v1944 = vld [vmem:[#allocation7 + $0xf0] sm:$0xff]
        %v1945 = vld [vmem:[#allocation7 + $0xf8] sm:$0xff]
        %v1946 = vld [vmem:[%s4] sm:$0x3]
        %v1948 = vlaneseq
        %v1949 = vshrl.u32 %v1948, 7
        %v1950 = vsub.s32 0, %v1949
        %v1951 = vrot.slane %v1946, %v1950
        %v1952 = vlaneseq
        %v1953 = vshrl.u32 %v1952, 7
        %v1954 = vsub.s32 1, %v1953
        %v1955 = vrot.slane %v1946, %v1954
        %vm1966 = vcmask 1041409
        %v1967 = vsel %vm1966, %v1871, %v1864
        %vm1968 = vcmask 1042434
        %v1969 = vsel %vm1968, %v1878, %v1967
        %vm1970 = vcmask 1043459
        %v1971 = vsel %vm1970, %v1885, %v1969
        %vm1972 = vcmask 1044484
        %v1973 = vsel %vm1972, %v1892, %v1971
        %vm1974 = vcmask 1045509
        %v1975 = vsel %vm1974, %v1899, %v1973
        %vm1976 = vcmask 1046534
        %v1977 = vsel %vm1976, %v1906, %v1975
        %vm1978 = vcmask 1047559
        %v1979 = vsel %vm1978, %v1913, %v1977
        %1981 = vmatprep.subr.mxu0 %v1915
        %1982 = vmatpush1.msra.mxu0 %v1914
        %1983 = vmatprep.subr.mxu0 %v1917
        %1984 = vmatpush1.msra.mxu0 %v1916
        %1985 = vmatprep.subr.mxu0 %v1919
        %1986 = vmatpush1.msra.mxu0 %v1918
        %1987 = vmatprep.subr.mxu0 %v1921
        %1988 = vmatpush1.msra.mxu0 %v1920
        %1989 = vmatprep.subr.mxu0 %v1923
        %1990 = vmatpush1.msra.mxu0 %v1922
        %1991 = vmatprep.subr.mxu0 %v1925
        %1992 = vmatpush1.msra.mxu0 %v1924
        %1993 = vmatprep.subr.mxu0 %v1927
        %1994 = vmatpush1.msra.mxu0 %v1926
        %1995 = vmatprep.subr.mxu0 %v1929
        %1996 = vmatpush1.msra.mxu0 %v1928
        %1997 = vmatprep.subr.mxu0 %v1931
        %1998 = vmatpush1.msra.mxu0 %v1930
        %1999 = vmatprep.subr.mxu0 %v1933
        %2000 = vmatpush1.msra.mxu0 %v1932
        %2001 = vmatprep.subr.mxu0 %v1935
        %2002 = vmatpush1.msra.mxu0 %v1934
        %2003 = vmatprep.subr.mxu0 %v1937
        %2004 = vmatpush1.msra.mxu0 %v1936
        %2005 = vmatprep.subr.mxu0 %v1939
        %2006 = vmatpush1.msra.mxu0 %v1938
        %2007 = vmatprep.subr.mxu0 %v1941
        %2008 = vmatpush1.msra.mxu0 %v1940
        %2009 = vmatprep.subr.mxu0 %v1943
        %2010 = vmatpush1.msra.mxu0 %v1942
        %2011 = vmatprep.subr.mxu0 %v1945
        %2012 = vmatpush1.msra.mxu0 %v1944
        %2013 = vmatprep.subr.mxu0 0.0
        %2014 = vmatpush1.msra.mxu0 0.0
        %2015 = vmatprep.subr.mxu0 0.0
        %2016 = vmatpush1.msra.mxu0 0.0
        %2017 = vmatprep.subr.mxu0 0.0
        %2018 = vmatpush1.msra.mxu0 0.0
        %2019 = vmatprep.subr.mxu0 0.0
        %2020 = vmatpush1.msra.mxu0 0.0
        %2021 = vmatprep.subr.mxu0 0.0
        %2022 = vmatpush1.msra.mxu0 0.0
        %2023 = vmatprep.subr.mxu0 0.0
        %2024 = vmatpush1.msra.mxu0 0.0
        %2025 = vmatprep.subr.mxu0 0.0
        %2026 = vmatpush1.msra.mxu0 0.0
        %2027 = vmatprep.subr.mxu0 0.0
        %2028 = vmatpush1.msra.mxu0 0.0
        %2029 = vmatprep.subr.mxu0 0.0
        %2030 = vmatpush1.msra.mxu0 0.0
        %2031 = vmatprep.subr.mxu0 0.0
        %2032 = vmatpush1.msra.mxu0 0.0
        %2033 = vmatprep.subr.mxu0 0.0
        %2034 = vmatpush1.msra.mxu0 0.0
        %2035 = vmatprep.subr.mxu0 0.0
        %2036 = vmatpush1.msra.mxu0 0.0
        %2037 = vmatprep.subr.mxu0 0.0
        %2038 = vmatpush1.msra.mxu0 0.0
        %2039 = vmatprep.subr.mxu0 0.0
        %2040 = vmatpush1.msra.mxu0 0.0
        %2041 = vmatprep.subr.mxu0 0.0
        %2042 = vmatpush1.msra.mxu0 0.0
        %2043 = vmatprep.subr.mxu0 0.0
        %2044 = vmatpush1.msra.mxu0 0.0
        %2045 = vmatprep.mubr.f32.mxu0 0.0
        %2046 = vmatmul.mubr.f32.gmra.mrb[0].mxu0 %v1979
        %v2047 = vpop.f32.mrb[0].mxu0
        %v2048 = vadd.f32 %v1951, %v2047
        %v2049 = vpop.f32.mrb[0].mxu0
        %v2050 = vadd.f32 %v1955, %v2049
        %2051 = vdwg.mxu0
        %v2052 = vmax.f32 %v2048, 0.0
        %v2053 = vxor.u32 %v2050, 2147483648
        %v2054 = vmul.f32 %v2053, 1.442695
        %v2055 = vpow.pop %v2054
        %v2056 = vadd.f32 %v2055, 1.0
        %v2057 = vrcp.pop %v2056
        %v2058 = vmul.f32 1.0, %v2057
        %v2059 = vmul.f32 %v2058, %v2052
        %v2060 = vsub.f32 1.0, %v2058
        %v2061 = vmul.f32 %v2060, %v1979
        %v2062 = vadd.f32 %v2059, %v2061
        %2063 = vst [vmem:[%s270] sm:$0xff] %v2062
        %s2064 = sand.u32 %s141, 1
        %s2065 = scalar_lea.sflag [#allocation4], %s2064
        %s2066 = sand.u32 %s141, 1
        %s2067 = smul.addr %s2066, 8
        %s2068 = scalar_lea.vmem [#allocation8], %s2067
        // Predicated region
        $region53: #{tpu_custom_call.1} parent=39 // pred_check
          %p2069 = pneg %p151
        $region54: #{tpu_custom_call.1} parent=39 // pred_check_branch
          %2071 = sbr.rel (%p2069) target = $region56
        $region55: #{tpu_custom_call.1} parent=39 // pred_region
          %s2073 = ssub.s32 128, 128
          %2074 = vsyncadd %s2065, %s2073
          %s2075 = smul.addr %s23, 128
          %s2076 = scalar_lea.hbm %s5, %s2075
          %s2078 = sshll.u32 %s2068, 4
          %s2079 = int_to_ptr.vmem [resolvable:$true] %s2078
          %2081 = dma.vmem_to_hbm [thread:$0]  %s2079, 128, %s2076, %s2065
        $region56: #{tpu_custom_call.1} parent=39 // pred_fallthru
          _
      $region40: #{tpu_custom_call.1} parent=5 // pred_fallthru
        _
      %p2082 = scmp.le.s32.totalorder 2, %s18
      // Predicated region
      $region57: #{tpu_custom_call.1} parent=5 // pred_check
        %p2083 = pneg %p2082
      $region58: #{tpu_custom_call.1} parent=5 // pred_check_branch
        %2085 = sbr.rel (%p2083) target = $region60
      $region59: #{tpu_custom_call.1} parent=5 // pred_region
        %s2086 = ssub.s32 %s18, 2
        // Predicated region
        $region61: #{tpu_custom_call.1} parent=59 // pred_check
          %p2087 = pneg %p157
        $region62: #{tpu_custom_call.1} parent=59 // pred_check_branch
          %2089 = sbr.rel (%p2087) target = $region64
        $region63: #{tpu_custom_call.1} parent=59 // pred_region
          %s2090 = sand.u32 %s142, 1
          %s2091 = scalar_lea.sflag [#allocation4], %s2090
          %s2092 = sand.u32 %s142, 1
          %s2093 = smul.addr %s2092, 8
          %s2094 = scalar_lea.vmem [#allocation8], %s2093
          %2095 = dma.done %s2091, 128
        $region64: #{tpu_custom_call.1} parent=59 // pred_fallthru
          _
      $region60: #{tpu_custom_call.1} parent=5 // pred_fallthru
        _
    $region6: #{tpu_custom_call.1} parent=1 // loop_footer
      %s22 = sadd.s32 1, %s18
    $region7: #{tpu_custom_call.1} parent=1 // loop_footer_branch
      %17 = sbr.rel target = $region3
    $region8: #{tpu_custom_call.1} parent=1 // loop_exit
      _
    %2096 = vsyncpa [#allocation3], 1
    %s2097 = scalar_lea.sflag [#allocation3], 1
    %2098 = vsyncpa %s2097, 1
    %2099 = vsyncpa [#allocation6], 1
    %2100 = vsyncpa [#allocation4], 1
    %s2101 = scalar_lea.sflag [#allocation4], 1
    %2102 = vsyncpa %s2101, 1

</llo_original>
